<compile_context>
chip_gen: v5e
topology: v5e:2x2
jax: 0.10.0
libtpu: 0.0.40
codegen_flags: <defaults>
</compile_context>

<pallas_src>
import jax
import jax.numpy as jnp
from jax.experimental import pallas as pl
from jax.experimental.pallas import tpu as pltpu


# ----------------------------- kernel ---------------------------------------

def _attn_softmax_kernel(q_ref, enc_ref, out_ref):
    # Per-grid-step shapes:
    #   q_ref   : [TB, D]      folded query (== rnn state for att_type='dot')
    #   enc_ref : [TB, S, D]   encoder states for this batch tile
    #   out_ref : [TB, S]      softmax attention weights
    q = q_ref[...].astype(jnp.float32)                       # [TB, D]
    enc = enc_ref[...].astype(jnp.float32)                   # [TB, S, D]

    # D-reduction with f32 accumulation (hidden under the enc DMA; mem-bound).
    scores = jnp.sum(enc * q[:, None, :], axis=-1)           # [TB, S]

    # Numerically stable softmax over the sequence dim (== dim=1 of [B, S]).
    m = jnp.max(scores, axis=-1, keepdims=True)              # [TB, 1]
    e = jnp.exp(scores - m)                                  # [TB, S]
    denom = jnp.sum(e, axis=-1, keepdims=True)               # [TB, 1]
    inv = 1.0 / denom                                        # exact; tiny [TB, 1]
    out_ref[...] = (e * inv).astype(out_ref.dtype)


# ----------------------------- wrappers --------------------------------------

def _attn_softmax(q, encoder_outs):
    """Shared attention kernel: softmax_s( encoder_outs[b,s,:] . q[b,:] )."""
    B, S, D = encoder_outs.shape
    assert q.shape == (B, D)

    # Batch rows per grid step: 8 gives sublane-dense output blocks; if B is not
    # a multiple of 8, fall back to one full-batch block (block == full dim is
    # always a legal BlockSpec).
    TB = 8 if B % 8 == 0 else B
    grid = (B // TB,)

    return pl.pallas_call(
        _attn_softmax_kernel,
        out_shape=jax.ShapeDtypeStruct((B, S), jnp.float32),
        grid_spec=pltpu.PrefetchScalarGridSpec(
            num_scalar_prefetch=0,
            grid=grid,
            in_specs=[
                pl.BlockSpec((TB, D), lambda b: (b, 0)),
                pl.BlockSpec((TB, S, D), lambda b: (b, 0, 0)),
            ],
            out_specs=pl.BlockSpec((TB, S), lambda b: (b, 0)),
        ),
        compiler_params=pltpu.CompilerParams(
            dimension_semantics=("parallel",)),
    )(q, encoder_outs)


def dot_attn(this_rnn_out, encoder_outs):
    """att_type='dot' (requires inp_size == out_size)."""
    return _attn_softmax(this_rnn_out, encoder_outs)


def general_attn(this_rnn_out, encoder_outs, w_t, bias):
    """att_type='general'.

    w_t : [inp_size, out_size]  (PyTorch nn.Linear weight, pre-transposed)
    bias: [out_size]

    Fold:  softmax_s( (enc @ w_t + bias) . rnn )
         = softmax_s( enc . (rnn @ w_t^T) + bias.rnn )
         = softmax_s( enc . q ),   q = rnn @ w_t^T
    The bias term is a per-row additive constant -> exactly cancels in softmax.
    """
    del bias  # drops out of softmax (per-row constant); kept for API parity
    q = jnp.dot(this_rnn_out, w_t.T)          # tiny [B,Dout]x[Dout,Din] in XLA
    return _attn_softmax(q, encoder_outs)


# ------------------------- pure-JAX references --------------------------------

def _ref_general(rnn, enc, w_t, b):
    mapped = enc @ w_t + b                                   # [B, S, D_out]
    scores = jnp.sum(mapped * rnn[:, None, :], axis=-1)      # [B, S]
    return jax.nn.softmax(scores, axis=1)


def _ref_dot(rnn, enc):
    scores = jnp.sum(enc * rnn[:, None, :], axis=-1)
    return jax.nn.softmax(scores, axis=1)


# --------------------------------- main ---------------------------------------

if __name__ == "__main__":
    # inp_size == out_size so att_type='dot' is also valid; lane/sublane-aligned.
    B, S, INP, OUT = 16, 128, 128, 128

    key = jax.random.PRNGKey(0)
    k1, k2, k3, k4 = jax.random.split(key, 4)

    this_rnn_out = jax.random.normal(k1, (B, OUT), dtype=jnp.float32)
    encoder_outs = jax.random.normal(k2, (B, S, INP), dtype=jnp.float32)

    # nn.Linear(inp_size, out_size): PyTorch weight is [out, in]; pre-transposed.
    bound = 1.0 / jnp.sqrt(INP)
    w_t = jax.random.uniform(k3, (INP, OUT), jnp.float32, -bound, bound)
    bias = jax.random.uniform(k4, (OUT,), jnp.float32, -bound, bound)

    # att_type='general'
    out_general = jax.block_until_ready(
        general_attn(this_rnn_out, encoder_outs, w_t, bias))
    ref_general = _ref_general(this_rnn_out, encoder_outs, w_t, bias)

    # att_type='dot'
    out_dot = jax.block_until_ready(dot_attn(this_rnn_out, encoder_outs))
    ref_dot = _ref_dot(this_rnn_out, encoder_outs)

    assert out_general.shape == (B, S) and out_dot.shape == (B, S)
    assert jnp.allclose(out_general, ref_general, atol=1e-4, rtol=1e-4)
    assert jnp.allclose(out_dot, ref_dot, atol=1e-4, rtol=1e-4)
    # softmax rows sum to ~1 (exact reciprocal in the epilogue now)
    assert jnp.allclose(jnp.sum(out_general, axis=1), 1.0, atol=1e-4)
    assert jnp.allclose(jnp.sum(out_dot, axis=1), 1.0, atol=1e-4)

    print("KERNEL_OK")
</pallas_src>

<mosaic_0001>
module attributes {stable_mosaic.version = 11 : i64} {
  func.func @_attn_softmax_kernel(%arg0: i32, %arg1: memref<8x128xf32, #tpu.memory_space<vmem>>, %arg2: memref<8x128x128xf32, #tpu.memory_space<vmem>>, %arg3: memref<8x128xf32, #tpu.memory_space<vmem>>) attributes {dimension_semantics = [#tpu.dimension_semantics<parallel>], iteration_bounds = array<i64: 2>, scalar_prefetch = 0 : i64, scratch_operands = 0 : i64, tpu.core_type = #tpu.core_type<tc>, window_params = [{transform_indices = @transform_0, window_bounds = array<i64: 8, 128>}, {transform_indices = @transform_1, window_bounds = array<i64: 8, 128, 128>}, {transform_indices = @transform_2, window_bounds = array<i64: 8, 128>}]} {
    %c0 = arith.constant 0 : index
    %c0_0 = arith.constant 0 : index
    %0 = vector.load %arg1[%c0, %c0_0] : memref<8x128xf32, #tpu.memory_space<vmem>>, vector<8x128xf32>
    %c0_1 = arith.constant 0 : index
    %c0_2 = arith.constant 0 : index
    %c0_3 = arith.constant 0 : index
    %1 = vector.load %arg2[%c0_1, %c0_2, %c0_3] : memref<8x128x128xf32, #tpu.memory_space<vmem>>, vector<8x128x128xf32>
    %2 = vector.shape_cast %0 : vector<8x128xf32> to vector<8x1x128xf32>
    %3 = vector.broadcast %2 : vector<8x1x128xf32> to vector<8x128x128xf32>
    %4 = arith.mulf %1, %3 : vector<8x128x128xf32>
    %cst = arith.constant dense<0.000000e+00> : vector<8x128xf32>
    %5 = vector.multi_reduction <add>, %4, %cst [2] : vector<8x128x128xf32> to vector<8x128xf32>
    %cst_4 = arith.constant dense<0xFF800000> : vector<8xf32>
    %6 = vector.multi_reduction <maximumf>, %5, %cst_4 [1] : vector<8x128xf32> to vector<8xf32>
    %7 = vector.shape_cast %6 : vector<8xf32> to vector<8x1xf32>
    %8 = vector.broadcast %7 : vector<8x1xf32> to vector<8x128xf32>
    %9 = arith.subf %5, %8 : vector<8x128xf32>
    %10 = math.exp %9 : vector<8x128xf32>
    %cst_5 = arith.constant dense<0.000000e+00> : vector<8xf32>
    %11 = vector.multi_reduction <add>, %10, %cst_5 [1] : vector<8x128xf32> to vector<8xf32>
    %12 = vector.shape_cast %11 : vector<8xf32> to vector<8x1xf32>
    %cst_6 = arith.constant 1.000000e+00 : f32
    %13 = vector.broadcast %cst_6 : f32 to vector<8x1xf32>
    %14 = arith.divf %13, %12 : vector<8x1xf32>
    %15 = vector.broadcast %14 : vector<8x1xf32> to vector<8x128xf32>
    %16 = arith.mulf %10, %15 : vector<8x128xf32>
    %c0_7 = arith.constant 0 : index
    %c0_8 = arith.constant 0 : index
    %17 = vector.load %arg3[%c0_7, %c0_8] : memref<8x128xf32, #tpu.memory_space<vmem>>, vector<8x128xf32>
    tpu.vector_store %arg3[%c0_7, %c0_8], %16 {strides = array<i32>} : memref<8x128xf32, #tpu.memory_space<vmem>>, vector<8x128xf32>,
    return
  }
  func.func @transform_0(%arg0: i32) -> (i32, i32) {
    %c0_i32 = arith.constant 0 : i32
    %c0_i32_0 = arith.constant 0 : i32
    return %arg0, %c0_i32 : i32, i32
  }
  func.func @transform_1(%arg0: i32) -> (i32, i32, i32) {
    %c0_i32 = arith.constant 0 : i32
    %c0_i32_0 = arith.constant 0 : i32
    %c0_i32_1 = arith.constant 0 : i32
    return %arg0, %c0_i32, %c0_i32_0 : i32, i32, i32
  }
  func.func @transform_2(%arg0: i32) -> (i32, i32) {
    %c0_i32 = arith.constant 0 : i32
    %c0_i32_0 = arith.constant 0 : i32
    return %arg0, %c0_i32 : i32, i32
  }
}

</mosaic_0001>

<llo_original>
// kernel: tpu_custom_call.1
$region0: #{tpu_custom_call.1}
  #allocation0 [shape = 'u32[]', space=smem, size = 0x4, offset = 0x4, fixed_abs, tag = 'smem constant byte address 0x4 - core index']
  #allocation1 [shape = 'u32[72,128]{1,0:T(1,128)}', space=vmem, size = 0x9000, scoped, tag = 'internal scratch']
  %s0 = inlined_call_operand.hbm [shape: f32[16,128], index: 0, kind: input, shape index: {}]
  %s1 = inlined_call_operand.hbm [shape: f32[16,128,128], index: 1, kind: input, shape index: {}]
  %s2 = inlined_call_operand.hbm [shape: f32[16,128], index: 2, kind: output, shape index: {}]
  %s3 = sld [smem:[#allocation0]]
  $region49: #{tpu_custom_call.1} parent=0
    _
  %s5 = ssub.s32 1, %s3
  %s6 = scalar_select 0, %s5, %s3
  $region1: #{tpu_custom_call.1} parent=0
    #allocation2 [shape = 'u8[8192]{0}', space=vmem, size = 0x2000, scoped, tag = 'input window, operand 0']
    #allocation3 [shape = 's32[2]{0}', space=sflag, size = 0x8, scoped, tag = 'scoped memory for tpu_custom_call.1']
    #allocation4 [shape = 's32[2]{0}', space=sflag, size = 0x8, scoped, tag = 'scoped memory for tpu_custom_call.1']
    #allocation5 [shape = 'u8[1048576]{0}', space=vmem, size = 0x100000, scoped, tag = 'input window, operand 1']
    #allocation6 [shape = 's32[2]{0}', space=sflag, size = 0x8, scoped, tag = 'scoped memory for tpu_custom_call.1']
    #allocation7 [shape = 'u8[8192]{0}', space=vmem, size = 0x2000, scoped, tag = 'output window, operand 0']
    %7 = vsyncpa [#allocation3], 0
    %s8 = scalar_lea.sflag [#allocation3], 1
    %9 = vsyncpa %s8, 0
    %10 = vsyncpa [#allocation6], 0
    %s11 = scalar_lea.sflag [#allocation6], 1
    %12 = vsyncpa %s11, 0
    %13 = vsyncpa [#allocation4], 0
    %s14 = scalar_lea.sflag [#allocation4], 1
    %15 = vsyncpa %s14, 0
    loop: start=0, step=1, limit=4
    $region2: #{tpu_custom_call.1} parent=1 // loop_pre_header
      _
    $region3: #{tpu_custom_call.1} parent=1 // loop_header
      %s17 = sphi 0, %s21
      %p18 = scmp.ge.s32.totalorder %s17, 4
      %s27 = sphi 0, %s29
      %s30 = sphi 0, %s27
      %s31 = sphi 0, %s30
      %s47 = sphi 0, %s31
      %s53 = sphi 0, %s55
      %s56 = sphi 0, %s53
      %s57 = sphi 0, %s56
      %s73 = sphi 0, %s57
      %s79 = sphi 0, %s81
      %s82 = sphi 0, %s79
      %s83 = sphi 0, %s82
      %s99 = sphi 0, %s83
    $region4: #{tpu_custom_call.1} parent=1 // loop_header_branch
      %20 = sbr.rel (%p18) target = $region8
    $region5: #{tpu_custom_call.1} parent=1 // loop_body
      %s22 = ssub.s32 %s17, 1
      %s23 = ssub.s32 %s17, 2
      %s24 = sadd.s32 %s17, 1
      %s25 = ssub.s32 %s17, %s24
      %p26 = scmp.eq.s32.totalorder %s25, 0
      %s28 = sadd.s32 %s27, 1
      %s29 = scalar_select %p26, %s27, %s28
      %p32 = pneg %p26
      %p33 = scmp.eq.s32.totalorder %s17, 1
      %p34 = por %p32, %p33
      %p35 = scmp.ne.s32.totalorder %s27, %s30
      %p36 = scmp.eq.s32.totalorder %s17, 0
      %p37 = por %p35, %p36
      %p38 = scmp.ne.s32.totalorder %s27, %s30
      %p39 = scmp.eq.s32.totalorder %s22, 1
      %p40 = por %p38, %p39
      %p41 = scmp.ne.s32.totalorder %s30, %s31
      %p42 = scmp.eq.s32.totalorder %s22, 0
      %p43 = por %p41, %p42
      %p44 = scmp.ne.s32.totalorder %s30, %s31
      %p45 = scmp.eq.s32.totalorder %s23, 1
      %p46 = por %p44, %p45
      %p48 = scmp.ne.s32.totalorder %s31, %s47
      %p49 = scmp.eq.s32.totalorder %s23, 0
      %p50 = por %p48, %p49
      %s51 = ssub.s32 %s17, %s24
      %p52 = scmp.eq.s32.totalorder %s51, 0
      %s54 = sadd.s32 %s53, 1
      %s55 = scalar_select %p52, %s53, %s54
      %p58 = pneg %p52
      %p59 = scmp.eq.s32.totalorder %s17, 1
      %p60 = por %p58, %p59
      %p61 = scmp.ne.s32.totalorder %s53, %s56
      %p62 = scmp.eq.s32.totalorder %s17, 0
      %p63 = por %p61, %p62
      %p64 = scmp.ne.s32.totalorder %s53, %s56
      %p65 = scmp.eq.s32.totalorder %s22, 1
      %p66 = por %p64, %p65
      %p67 = scmp.ne.s32.totalorder %s56, %s57
      %p68 = scmp.eq.s32.totalorder %s22, 0
      %p69 = por %p67, %p68
      %p70 = scmp.ne.s32.totalorder %s56, %s57
      %p71 = scmp.eq.s32.totalorder %s23, 1
      %p72 = por %p70, %p71
      %p74 = scmp.ne.s32.totalorder %s57, %s73
      %p75 = scmp.eq.s32.totalorder %s23, 0
      %p76 = por %p74, %p75
      %s77 = ssub.s32 %s17, %s24
      %p78 = scmp.eq.s32.totalorder %s77, 0
      %s80 = sadd.s32 %s79, 1
      %s81 = scalar_select %p78, %s79, %s80
      %p84 = pneg %p78
      %p85 = scmp.eq.s32.totalorder %s17, 1
      %p86 = por %p84, %p85
      %p87 = scmp.ne.s32.totalorder %s79, %s82
      %p88 = scmp.eq.s32.totalorder %s17, 0
      %p89 = por %p87, %p88
      %p90 = scmp.ne.s32.totalorder %s79, %s82
      %p91 = scmp.eq.s32.totalorder %s22, 1
      %p92 = por %p90, %p91
      %p93 = scmp.ne.s32.totalorder %s82, %s83
      %p94 = scmp.eq.s32.totalorder %s22, 0
      %p95 = por %p93, %p94
      %p96 = scmp.ne.s32.totalorder %s82, %s83
      %p97 = scmp.eq.s32.totalorder %s23, 1
      %p98 = por %p96, %p97
      %p100 = scmp.ne.s32.totalorder %s83, %s99
      %p101 = scmp.eq.s32.totalorder %s23, 0
      %p102 = por %p100, %p101
      %p103 = scmp.le.s32.totalorder 1, %s17
      %p104 = scmp.lt.s32.totalorder %s17, 3
      %p105 = pnand %p103, %p104
      %p106 = pneg %p105
      // Predicated region
      $region9: #{tpu_custom_call.1} parent=5 // pred_check
        _
      $region10: #{tpu_custom_call.1} parent=5 // pred_check_branch
        %108 = sbr.rel (%p105) target = $region12
      $region11: #{tpu_custom_call.1} parent=5 // pred_region
        %s109 = ssub.s32 %s17, 1
      $region12: #{tpu_custom_call.1} parent=5 // pred_fallthru
        _
      %p110 = scmp.lt.s32.totalorder %s17, 2
      // Predicated region
      $region13: #{tpu_custom_call.1} parent=5 // pred_check
        %p111 = pneg %p110
      $region14: #{tpu_custom_call.1} parent=5 // pred_check_branch
        %113 = sbr.rel (%p111) target = $region16
      $region15: #{tpu_custom_call.1} parent=5 // pred_region
        // Predicated region
        $region17: #{tpu_custom_call.1} parent=15 // pred_check
          %p114 = pneg %p37
        $region18: #{tpu_custom_call.1} parent=15 // pred_check_branch
          %116 = sbr.rel (%p114) target = $region20
        $region19: #{tpu_custom_call.1} parent=15 // pred_region
          %s117 = sand.u32 %s27, 1
          %s118 = scalar_lea.sflag [#allocation3], %s117
          %s119 = sand.u32 %s27, 1
          %s120 = smul.addr %s119, 8
          %s121 = scalar_lea.vmem [#allocation2], %s120
          %123 = vsyncadd %s118, 0
          %s124 = smul.addr %s17, 8
          %s125 = scalar_lea.hbm %s0, %s124
          %s127 = sshll.u32 %s125, 4
          %s128 = int_to_ptr.hbm [resolvable:$true] %s127
          %s129 = sshll.u32 %s121, 4
          %s130 = int_to_ptr.vmem [resolvable:$true] %s129
          %132 = dma.hbm_to_vmem [thread:$0]  %s128, 128, %s130, %s118
        $region20: #{tpu_custom_call.1} parent=15 // pred_fallthru
          _
        // Predicated region
        $region21: #{tpu_custom_call.1} parent=15 // pred_check
          %p133 = pneg %p63
        $region22: #{tpu_custom_call.1} parent=15 // pred_check_branch
          %135 = sbr.rel (%p133) target = $region24
        $region23: #{tpu_custom_call.1} parent=15 // pred_region
          %s136 = sand.u32 %s53, 1
          %s137 = scalar_lea.sflag [#allocation6], %s136
          %s138 = sand.u32 %s53, 1
          %s139 = smul.addr %s138, 1024
          %s140 = scalar_lea.vmem [#allocation5], %s139
          %s141 = smul.u32 8, %s17
          %143 = vsyncadd %s137, 0
          %s144 = smul.addr %s141, 16
          %s145 = smul.addr %s144, 8
          %s146 = scalar_lea.hbm %s1, %s145
          %s147 = sshll.u32 %s146, 4
          %s148 = int_to_ptr.hbm [resolvable:$true] %s147
          %s149 = sshll.u32 %s140, 4
          %s150 = int_to_ptr.vmem [resolvable:$true] %s149
          %155 = dma.hbm_to_vmem [thread:$0]  %s148, 16384, %s150, %s137, 128, 128, 8
        $region24: #{tpu_custom_call.1} parent=15 // pred_fallthru
          _
      $region16: #{tpu_custom_call.1} parent=5 // pred_fallthru
        _
      %p156 = scmp.le.s32.totalorder 1, %s17
      %p157 = scmp.lt.s32.totalorder %s17, 3
      %p158 = pnand %p156, %p157
      %p159 = pneg %p158
      // Predicated region
      $region25: #{tpu_custom_call.1} parent=5 // pred_check
        _
      $region26: #{tpu_custom_call.1} parent=5 // pred_check_branch
        %161 = sbr.rel (%p158) target = $region28
      $region27: #{tpu_custom_call.1} parent=5 // pred_region
        %s162 = ssub.s32 %s17, 1
        %s163 = sand.u32 %s30, 1
        %s164 = scalar_lea.sflag [#allocation3], %s163
        %s165 = sand.u32 %s30, 1
        %s166 = smul.addr %s165, 8
        %s167 = scalar_lea.vmem [#allocation2], %s166
        // Predicated region
        $region29: #{tpu_custom_call.1} parent=27 // pred_check
          %p168 = pneg %p43
        $region30: #{tpu_custom_call.1} parent=27 // pred_check_branch
          %170 = sbr.rel (%p168) target = $region32
        $region31: #{tpu_custom_call.1} parent=27 // pred_region
          %172 = dma.done %s164, 128
        $region32: #{tpu_custom_call.1} parent=27 // pred_fallthru
          _
        %s173 = sand.u32 %s56, 1
        %s174 = scalar_lea.sflag [#allocation6], %s173
        %s175 = sand.u32 %s56, 1
        %s176 = smul.addr %s175, 1024
        %s177 = scalar_lea.vmem [#allocation5], %s176
        // Predicated region
        $region33: #{tpu_custom_call.1} parent=27 // pred_check
          %p178 = pneg %p69
        $region34: #{tpu_custom_call.1} parent=27 // pred_check_branch
          %180 = sbr.rel (%p178) target = $region36
        $region35: #{tpu_custom_call.1} parent=27 // pred_region
          %182 = dma.done %s174, 16384
        $region36: #{tpu_custom_call.1} parent=27 // pred_fallthru
          _
        %s183 = sand.u32 %s30, 1
        %s184 = scalar_lea.sflag [#allocation3], %s183
        %s185 = sand.u32 %s30, 1
        %s186 = smul.addr %s185, 8
        %s187 = scalar_lea.vmem [#allocation2], %s186
        %p188 = pneg %p43
        %p189 = pneg %p40
        %s190 = sand.u32 %s56, 1
        %s191 = scalar_lea.sflag [#allocation6], %s190
        %s192 = sand.u32 %s56, 1
        %s193 = smul.addr %s192, 1024
        %s194 = scalar_lea.vmem [#allocation5], %s193
        %p195 = pneg %p69
        %p196 = pneg %p66
        %p197 = pneg %p95
        %p198 = pneg %p92
        %s199 = sand.u32 %s82, 1
        %s200 = scalar_lea.sflag [#allocation4], %s199
        %s201 = sand.u32 %s82, 1
        %s202 = smul.addr %s201, 8
        %s203 = scalar_lea.vmem [#allocation7], %s202
        %s204 = smul.u32 8, %s22
        %v205 = vld [vmem:[%s167] sm:$0xff]
        %v206 = vld [vmem:[%s177] sm:$0xff]
        %v207 = vld [vmem:[%s177 + $0x8] sm:$0xff]
        %v208 = vld [vmem:[%s177 + $0x10] sm:$0xff]
        %v209 = vld [vmem:[%s177 + $0x18] sm:$0xff]
        %v210 = vld [vmem:[%s177 + $0x20] sm:$0xff]
        %v211 = vld [vmem:[%s177 + $0x28] sm:$0xff]
        %v212 = vld [vmem:[%s177 + $0x30] sm:$0xff]
        %v213 = vld [vmem:[%s177 + $0x38] sm:$0xff]
        %v214 = vld [vmem:[%s177 + $0x40] sm:$0xff]
        %v215 = vld [vmem:[%s177 + $0x48] sm:$0xff]
        %v216 = vld [vmem:[%s177 + $0x50] sm:$0xff]
        %v217 = vld [vmem:[%s177 + $0x58] sm:$0xff]
        %v218 = vld [vmem:[%s177 + $0x60] sm:$0xff]
        %v219 = vld [vmem:[%s177 + $0x68] sm:$0xff]
        %v220 = vld [vmem:[%s177 + $0x70] sm:$0xff]
        %v221 = vld [vmem:[%s177 + $0x78] sm:$0xff]
        %v222 = vld [vmem:[%s177 + $0x80] sm:$0xff]
        %v223 = vld [vmem:[%s177 + $0x88] sm:$0xff]
        %v224 = vld [vmem:[%s177 + $0x90] sm:$0xff]
        %v225 = vld [vmem:[%s177 + $0x98] sm:$0xff]
        %v226 = vld [vmem:[%s177 + $0xa0] sm:$0xff]
        %v227 = vld [vmem:[%s177 + $0xa8] sm:$0xff]
        %v228 = vld [vmem:[%s177 + $0xb0] sm:$0xff]
        %v229 = vld [vmem:[%s177 + $0xb8] sm:$0xff]
        %v230 = vld [vmem:[%s177 + $0xc0] sm:$0xff]
        %v231 = vld [vmem:[%s177 + $0xc8] sm:$0xff]
        %v232 = vld [vmem:[%s177 + $0xd0] sm:$0xff]
        %v233 = vld [vmem:[%s177 + $0xd8] sm:$0xff]
        %v234 = vld [vmem:[%s177 + $0xe0] sm:$0xff]
        %v235 = vld [vmem:[%s177 + $0xe8] sm:$0xff]
        %v236 = vld [vmem:[%s177 + $0xf0] sm:$0xff]
        %v237 = vld [vmem:[%s177 + $0xf8] sm:$0xff]
        %v238 = vld [vmem:[%s177 + $0x100] sm:$0xff]
        %v239 = vld [vmem:[%s177 + $0x108] sm:$0xff]
        %v240 = vld [vmem:[%s177 + $0x110] sm:$0xff]
        %v241 = vld [vmem:[%s177 + $0x118] sm:$0xff]
        %v242 = vld [vmem:[%s177 + $0x120] sm:$0xff]
        %v243 = vld [vmem:[%s177 + $0x128] sm:$0xff]
        %v244 = vld [vmem:[%s177 + $0x130] sm:$0xff]
        %v245 = vld [vmem:[%s177 + $0x138] sm:$0xff]
        %v246 = vld [vmem:[%s177 + $0x140] sm:$0xff]
        %v247 = vld [vmem:[%s177 + $0x148] sm:$0xff]
        %v248 = vld [vmem:[%s177 + $0x150] sm:$0xff]
        %v249 = vld [vmem:[%s177 + $0x158] sm:$0xff]
        %v250 = vld [vmem:[%s177 + $0x160] sm:$0xff]
        %v251 = vld [vmem:[%s177 + $0x168] sm:$0xff]
        %v252 = vld [vmem:[%s177 + $0x170] sm:$0xff]
        %v253 = vld [vmem:[%s177 + $0x178] sm:$0xff]
        %v254 = vld [vmem:[%s177 + $0x180] sm:$0xff]
        %v255 = vld [vmem:[%s177 + $0x188] sm:$0xff]
        %v256 = vld [vmem:[%s177 + $0x190] sm:$0xff]
        %v257 = vld [vmem:[%s177 + $0x198] sm:$0xff]
        %v258 = vld [vmem:[%s177 + $0x1a0] sm:$0xff]
        %v259 = vld [vmem:[%s177 + $0x1a8] sm:$0xff]
        %v260 = vld [vmem:[%s177 + $0x1b0] sm:$0xff]
        %v261 = vld [vmem:[%s177 + $0x1b8] sm:$0xff]
        %v262 = vld [vmem:[%s177 + $0x1c0] sm:$0xff]
        %v263 = vld [vmem:[%s177 + $0x1c8] sm:$0xff]
        %v264 = vld [vmem:[%s177 + $0x1d0] sm:$0xff]
        %v265 = vld [vmem:[%s177 + $0x1d8] sm:$0xff]
        %v266 = vld [vmem:[%s177 + $0x1e0] sm:$0xff]
        %v267 = vld [vmem:[%s177 + $0x1e8] sm:$0xff]
        %v268 = vld [vmem:[%s177 + $0x1f0] sm:$0xff]
        %v269 = vld [vmem:[%s177 + $0x1f8] sm:$0xff]
        %v270 = vld [vmem:[%s177 + $0x200] sm:$0xff]
        %v271 = vld [vmem:[%s177 + $0x208] sm:$0xff]
        %v272 = vld [vmem:[%s177 + $0x210] sm:$0xff]
        %v273 = vld [vmem:[%s177 + $0x218] sm:$0xff]
        %v274 = vld [vmem:[%s177 + $0x220] sm:$0xff]
        %v275 = vld [vmem:[%s177 + $0x228] sm:$0xff]
        %v276 = vld [vmem:[%s177 + $0x230] sm:$0xff]
        %v277 = vld [vmem:[%s177 + $0x238] sm:$0xff]
        %v278 = vld [vmem:[%s177 + $0x240] sm:$0xff]
        %v279 = vld [vmem:[%s177 + $0x248] sm:$0xff]
        %v280 = vld [vmem:[%s177 + $0x250] sm:$0xff]
        %v281 = vld [vmem:[%s177 + $0x258] sm:$0xff]
        %v282 = vld [vmem:[%s177 + $0x260] sm:$0xff]
        %v283 = vld [vmem:[%s177 + $0x268] sm:$0xff]
        %v284 = vld [vmem:[%s177 + $0x270] sm:$0xff]
        %v285 = vld [vmem:[%s177 + $0x278] sm:$0xff]
        %v286 = vld [vmem:[%s177 + $0x280] sm:$0xff]
        %v287 = vld [vmem:[%s177 + $0x288] sm:$0xff]
        %v288 = vld [vmem:[%s177 + $0x290] sm:$0xff]
        %v289 = vld [vmem:[%s177 + $0x298] sm:$0xff]
        %v290 = vld [vmem:[%s177 + $0x2a0] sm:$0xff]
        %v291 = vld [vmem:[%s177 + $0x2a8] sm:$0xff]
        %v292 = vld [vmem:[%s177 + $0x2b0] sm:$0xff]
        %v293 = vld [vmem:[%s177 + $0x2b8] sm:$0xff]
        %v294 = vld [vmem:[%s177 + $0x2c0] sm:$0xff]
        %v295 = vld [vmem:[%s177 + $0x2c8] sm:$0xff]
        %v296 = vld [vmem:[%s177 + $0x2d0] sm:$0xff]
        %v297 = vld [vmem:[%s177 + $0x2d8] sm:$0xff]
        %v298 = vld [vmem:[%s177 + $0x2e0] sm:$0xff]
        %v299 = vld [vmem:[%s177 + $0x2e8] sm:$0xff]
        %v300 = vld [vmem:[%s177 + $0x2f0] sm:$0xff]
        %v301 = vld [vmem:[%s177 + $0x2f8] sm:$0xff]
        %v302 = vld [vmem:[%s177 + $0x300] sm:$0xff]
        %v303 = vld [vmem:[%s177 + $0x308] sm:$0xff]
        %v304 = vld [vmem:[%s177 + $0x310] sm:$0xff]
        %v305 = vld [vmem:[%s177 + $0x318] sm:$0xff]
        %v306 = vld [vmem:[%s177 + $0x320] sm:$0xff]
        %v307 = vld [vmem:[%s177 + $0x328] sm:$0xff]
        %v308 = vld [vmem:[%s177 + $0x330] sm:$0xff]
        %v309 = vld [vmem:[%s177 + $0x338] sm:$0xff]
        %v310 = vld [vmem:[%s177 + $0x340] sm:$0xff]
        %v311 = vld [vmem:[%s177 + $0x348] sm:$0xff]
        %v312 = vld [vmem:[%s177 + $0x350] sm:$0xff]
        %v313 = vld [vmem:[%s177 + $0x358] sm:$0xff]
        %v314 = vld [vmem:[%s177 + $0x360] sm:$0xff]
        %v315 = vld [vmem:[%s177 + $0x368] sm:$0xff]
        %v316 = vld [vmem:[%s177 + $0x370] sm:$0xff]
        %v317 = vld [vmem:[%s177 + $0x378] sm:$0xff]
        %v318 = vld [vmem:[%s177 + $0x380] sm:$0xff]
        %v319 = vld [vmem:[%s177 + $0x388] sm:$0xff]
        %v320 = vld [vmem:[%s177 + $0x390] sm:$0xff]
        %v321 = vld [vmem:[%s177 + $0x398] sm:$0xff]
        %v322 = vld [vmem:[%s177 + $0x3a0] sm:$0xff]
        %v323 = vld [vmem:[%s177 + $0x3a8] sm:$0xff]
        %v324 = vld [vmem:[%s177 + $0x3b0] sm:$0xff]
        %v325 = vld [vmem:[%s177 + $0x3b8] sm:$0xff]
        %v326 = vld [vmem:[%s177 + $0x3c0] sm:$0xff]
        %v327 = vld [vmem:[%s177 + $0x3c8] sm:$0xff]
        %v328 = vld [vmem:[%s177 + $0x3d0] sm:$0xff]
        %v329 = vld [vmem:[%s177 + $0x3d8] sm:$0xff]
        %v330 = vld [vmem:[%s177 + $0x3e0] sm:$0xff]
        %v331 = vld [vmem:[%s177 + $0x3e8] sm:$0xff]
        %v332 = vld [vmem:[%s177 + $0x3f0] sm:$0xff]
        %v333 = vld [vmem:[%s177 + $0x3f8] sm:$0xff]
        %v335 = vrot.slane %v205, 1
        %v336 = vrot.slane %v205, 2
        %v337 = vrot.slane %v205, 3
        %v338 = vrot.slane %v205, 4
        %v339 = vrot.slane %v205, 5
        %v340 = vrot.slane %v205, 6
        %v341 = vrot.slane %v205, 7
        %v342 = vperm.slane %v205, 0
        %v343 = vperm.slane %v335, 0
        %v344 = vperm.slane %v336, 0
        %v345 = vperm.slane %v337, 0
        %v346 = vperm.slane %v338, 0
        %v347 = vperm.slane %v339, 0
        %v348 = vperm.slane %v340, 0
        %v349 = vperm.slane %v341, 0
        %v358 = vmul.f32 %v206, %v342
        %v359 = vmul.f32 %v207, %v342
        %v360 = vmul.f32 %v208, %v342
        %v361 = vmul.f32 %v209, %v342
        %v362 = vmul.f32 %v210, %v342
        %v363 = vmul.f32 %v211, %v342
        %v364 = vmul.f32 %v212, %v342
        %v365 = vmul.f32 %v213, %v342
        %v366 = vmul.f32 %v214, %v342
        %v367 = vmul.f32 %v215, %v342
        %v368 = vmul.f32 %v216, %v342
        %v369 = vmul.f32 %v217, %v342
        %v370 = vmul.f32 %v218, %v342
        %v371 = vmul.f32 %v219, %v342
        %v372 = vmul.f32 %v220, %v342
        %v373 = vmul.f32 %v221, %v342
        %v374 = vmul.f32 %v222, %v343
        %v375 = vmul.f32 %v223, %v343
        %v376 = vmul.f32 %v224, %v343
        %v377 = vmul.f32 %v225, %v343
        %v378 = vmul.f32 %v226, %v343
        %v379 = vmul.f32 %v227, %v343
        %v380 = vmul.f32 %v228, %v343
        %v381 = vmul.f32 %v229, %v343
        %v382 = vmul.f32 %v230, %v343
        %v383 = vmul.f32 %v231, %v343
        %v384 = vmul.f32 %v232, %v343
        %v385 = vmul.f32 %v233, %v343
        %v386 = vmul.f32 %v234, %v343
        %v387 = vmul.f32 %v235, %v343
        %v388 = vmul.f32 %v236, %v343
        %v389 = vmul.f32 %v237, %v343
        %v390 = vmul.f32 %v238, %v344
        %v391 = vmul.f32 %v239, %v344
        %v392 = vmul.f32 %v240, %v344
        %v393 = vmul.f32 %v241, %v344
        %v394 = vmul.f32 %v242, %v344
        %v395 = vmul.f32 %v243, %v344
        %v396 = vmul.f32 %v244, %v344
        %v397 = vmul.f32 %v245, %v344
        %v398 = vmul.f32 %v246, %v344
        %v399 = vmul.f32 %v247, %v344
        %v400 = vmul.f32 %v248, %v344
        %v401 = vmul.f32 %v249, %v344
        %v402 = vmul.f32 %v250, %v344
        %v403 = vmul.f32 %v251, %v344
        %v404 = vmul.f32 %v252, %v344
        %v405 = vmul.f32 %v253, %v344
        %v406 = vmul.f32 %v254, %v345
        %v407 = vmul.f32 %v255, %v345
        %v408 = vmul.f32 %v256, %v345
        %v409 = vmul.f32 %v257, %v345
        %v410 = vmul.f32 %v258, %v345
        %v411 = vmul.f32 %v259, %v345
        %v412 = vmul.f32 %v260, %v345
        %v413 = vmul.f32 %v261, %v345
        %v414 = vmul.f32 %v262, %v345
        %v415 = vmul.f32 %v263, %v345
        %v416 = vmul.f32 %v264, %v345
        %v417 = vmul.f32 %v265, %v345
        %v418 = vmul.f32 %v266, %v345
        %v419 = vmul.f32 %v267, %v345
        %v420 = vmul.f32 %v268, %v345
        %v421 = vmul.f32 %v269, %v345
        %v422 = vmul.f32 %v270, %v346
        %v423 = vmul.f32 %v271, %v346
        %v424 = vmul.f32 %v272, %v346
        %v425 = vmul.f32 %v273, %v346
        %v426 = vmul.f32 %v274, %v346
        %v427 = vmul.f32 %v275, %v346
        %v428 = vmul.f32 %v276, %v346
        %v429 = vmul.f32 %v277, %v346
        %v430 = vmul.f32 %v278, %v346
        %v431 = vmul.f32 %v279, %v346
        %v432 = vmul.f32 %v280, %v346
        %v433 = vmul.f32 %v281, %v346
        %v434 = vmul.f32 %v282, %v346
        %v435 = vmul.f32 %v283, %v346
        %v436 = vmul.f32 %v284, %v346
        %v437 = vmul.f32 %v285, %v346
        %v438 = vmul.f32 %v286, %v347
        %v439 = vmul.f32 %v287, %v347
        %v440 = vmul.f32 %v288, %v347
        %v441 = vmul.f32 %v289, %v347
        %v442 = vmul.f32 %v290, %v347
        %v443 = vmul.f32 %v291, %v347
        %v444 = vmul.f32 %v292, %v347
        %v445 = vmul.f32 %v293, %v347
        %v446 = vmul.f32 %v294, %v347
        %v447 = vmul.f32 %v295, %v347
        %v448 = vmul.f32 %v296, %v347
        %v449 = vmul.f32 %v297, %v347
        %v450 = vmul.f32 %v298, %v347
        %v451 = vmul.f32 %v299, %v347
        %v452 = vmul.f32 %v300, %v347
        %v453 = vmul.f32 %v301, %v347
        %v454 = vmul.f32 %v302, %v348
        %v455 = vmul.f32 %v303, %v348
        %v456 = vmul.f32 %v304, %v348
        %v457 = vmul.f32 %v305, %v348
        %v458 = vmul.f32 %v306, %v348
        %v459 = vmul.f32 %v307, %v348
        %v460 = vmul.f32 %v308, %v348
        %v461 = vmul.f32 %v309, %v348
        %v462 = vmul.f32 %v310, %v348
        %v463 = vmul.f32 %v311, %v348
        %v464 = vmul.f32 %v312, %v348
        %v465 = vmul.f32 %v313, %v348
        %v466 = vmul.f32 %v314, %v348
        %v467 = vmul.f32 %v315, %v348
        %v468 = vmul.f32 %v316, %v348
        %v469 = vmul.f32 %v317, %v348
        %v470 = vmul.f32 %v318, %v349
        %v471 = vmul.f32 %v319, %v349
        %v472 = vmul.f32 %v320, %v349
        %v473 = vmul.f32 %v321, %v349
        %v474 = vmul.f32 %v322, %v349
        %v475 = vmul.f32 %v323, %v349
        %v476 = vmul.f32 %v324, %v349
        %v477 = vmul.f32 %v325, %v349
        %v478 = vmul.f32 %v326, %v349
        %v479 = vmul.f32 %v327, %v349
        %v480 = vmul.f32 %v328, %v349
        %v481 = vmul.f32 %v329, %v349
        %v482 = vmul.f32 %v330, %v349
        %v483 = vmul.f32 %v331, %v349
        %v484 = vmul.f32 %v332, %v349
        %v485 = vmul.f32 %v333, %v349
        %486 = vadd.xlane.f32.xlu0 %v358
        %v487 = vpop.xlane.xlu0 %486
        %488 = vadd.xlane.f32.xlu0 %v359
        %v489 = vpop.xlane.xlu0 %488
        %490 = vadd.xlane.f32.xlu0 %v360
        %v491 = vpop.xlane.xlu0 %490
        %492 = vadd.xlane.f32.xlu0 %v361
        %v493 = vpop.xlane.xlu0 %492
        %494 = vadd.xlane.f32.xlu0 %v362
        %v495 = vpop.xlane.xlu0 %494
        %496 = vadd.xlane.f32.xlu0 %v363
        %v497 = vpop.xlane.xlu0 %496
        %498 = vadd.xlane.f32.xlu0 %v364
        %v499 = vpop.xlane.xlu0 %498
        %500 = vadd.xlane.f32.xlu0 %v365
        %v501 = vpop.xlane.xlu0 %500
        %502 = vadd.xlane.f32.xlu0 %v366
        %v503 = vpop.xlane.xlu0 %502
        %504 = vadd.xlane.f32.xlu0 %v367
        %v505 = vpop.xlane.xlu0 %504
        %506 = vadd.xlane.f32.xlu0 %v368
        %v507 = vpop.xlane.xlu0 %506
        %508 = vadd.xlane.f32.xlu0 %v369
        %v509 = vpop.xlane.xlu0 %508
        %510 = vadd.xlane.f32.xlu0 %v370
        %v511 = vpop.xlane.xlu0 %510
        %512 = vadd.xlane.f32.xlu0 %v371
        %v513 = vpop.xlane.xlu0 %512
        %514 = vadd.xlane.f32.xlu0 %v372
        %v515 = vpop.xlane.xlu0 %514
        %516 = vadd.xlane.f32.xlu0 %v373
        %v517 = vpop.xlane.xlu0 %516
        %518 = vadd.xlane.f32.xlu0 %v374
        %v519 = vpop.xlane.xlu0 %518
        %520 = vadd.xlane.f32.xlu0 %v375
        %v521 = vpop.xlane.xlu0 %520
        %522 = vadd.xlane.f32.xlu0 %v376
        %v523 = vpop.xlane.xlu0 %522
        %524 = vadd.xlane.f32.xlu0 %v377
        %v525 = vpop.xlane.xlu0 %524
        %526 = vadd.xlane.f32.xlu0 %v378
        %v527 = vpop.xlane.xlu0 %526
        %528 = vadd.xlane.f32.xlu0 %v379
        %v529 = vpop.xlane.xlu0 %528
        %530 = vadd.xlane.f32.xlu0 %v380
        %v531 = vpop.xlane.xlu0 %530
        %532 = vadd.xlane.f32.xlu0 %v381
        %v533 = vpop.xlane.xlu0 %532
        %534 = vadd.xlane.f32.xlu0 %v382
        %v535 = vpop.xlane.xlu0 %534
        %536 = vadd.xlane.f32.xlu0 %v383
        %v537 = vpop.xlane.xlu0 %536
        %538 = vadd.xlane.f32.xlu0 %v384
        %v539 = vpop.xlane.xlu0 %538
        %540 = vadd.xlane.f32.xlu0 %v385
        %v541 = vpop.xlane.xlu0 %540
        %542 = vadd.xlane.f32.xlu0 %v386
        %v543 = vpop.xlane.xlu0 %542
        %544 = vadd.xlane.f32.xlu0 %v387
        %v545 = vpop.xlane.xlu0 %544
        %546 = vadd.xlane.f32.xlu0 %v388
        %v547 = vpop.xlane.xlu0 %546
        %548 = vadd.xlane.f32.xlu0 %v389
        %v549 = vpop.xlane.xlu0 %548
        %550 = vadd.xlane.f32.xlu0 %v390
        %v551 = vpop.xlane.xlu0 %550
        %552 = vadd.xlane.f32.xlu0 %v391
        %v553 = vpop.xlane.xlu0 %552
        %554 = vadd.xlane.f32.xlu0 %v392
        %v555 = vpop.xlane.xlu0 %554
        %556 = vadd.xlane.f32.xlu0 %v393
        %v557 = vpop.xlane.xlu0 %556
        %558 = vadd.xlane.f32.xlu0 %v394
        %v559 = vpop.xlane.xlu0 %558
        %560 = vadd.xlane.f32.xlu0 %v395
        %v561 = vpop.xlane.xlu0 %560
        %562 = vadd.xlane.f32.xlu0 %v396
        %v563 = vpop.xlane.xlu0 %562
        %564 = vadd.xlane.f32.xlu0 %v397
        %v565 = vpop.xlane.xlu0 %564
        %566 = vadd.xlane.f32.xlu0 %v398
        %v567 = vpop.xlane.xlu0 %566
        %568 = vadd.xlane.f32.xlu0 %v399
        %v569 = vpop.xlane.xlu0 %568
        %570 = vadd.xlane.f32.xlu0 %v400
        %v571 = vpop.xlane.xlu0 %570
        %572 = vadd.xlane.f32.xlu0 %v401
        %v573 = vpop.xlane.xlu0 %572
        %574 = vadd.xlane.f32.xlu0 %v402
        %v575 = vpop.xlane.xlu0 %574
        %576 = vadd.xlane.f32.xlu0 %v403
        %v577 = vpop.xlane.xlu0 %576
        %578 = vadd.xlane.f32.xlu0 %v404
        %v579 = vpop.xlane.xlu0 %578
        %580 = vadd.xlane.f32.xlu0 %v405
        %v581 = vpop.xlane.xlu0 %580
        %582 = vadd.xlane.f32.xlu0 %v406
        %v583 = vpop.xlane.xlu0 %582
        %584 = vadd.xlane.f32.xlu0 %v407
        %v585 = vpop.xlane.xlu0 %584
        %586 = vadd.xlane.f32.xlu0 %v408
        %v587 = vpop.xlane.xlu0 %586
        %588 = vadd.xlane.f32.xlu0 %v409
        %v589 = vpop.xlane.xlu0 %588
        %590 = vadd.xlane.f32.xlu0 %v410
        %v591 = vpop.xlane.xlu0 %590
        %592 = vadd.xlane.f32.xlu0 %v411
        %v593 = vpop.xlane.xlu0 %592
        %594 = vadd.xlane.f32.xlu0 %v412
        %v595 = vpop.xlane.xlu0 %594
        %596 = vadd.xlane.f32.xlu0 %v413
        %v597 = vpop.xlane.xlu0 %596
        %598 = vadd.xlane.f32.xlu0 %v414
        %v599 = vpop.xlane.xlu0 %598
        %600 = vadd.xlane.f32.xlu0 %v415
        %v601 = vpop.xlane.xlu0 %600
        %602 = vadd.xlane.f32.xlu0 %v416
        %v603 = vpop.xlane.xlu0 %602
        %604 = vadd.xlane.f32.xlu0 %v417
        %v605 = vpop.xlane.xlu0 %604
        %606 = vadd.xlane.f32.xlu0 %v418
        %v607 = vpop.xlane.xlu0 %606
        %608 = vadd.xlane.f32.xlu0 %v419
        %v609 = vpop.xlane.xlu0 %608
        %610 = vadd.xlane.f32.xlu0 %v420
        %v611 = vpop.xlane.xlu0 %610
        %612 = vadd.xlane.f32.xlu0 %v421
        %v613 = vpop.xlane.xlu0 %612
        %614 = vadd.xlane.f32.xlu0 %v422
        %v615 = vpop.xlane.xlu0 %614
        %616 = vadd.xlane.f32.xlu0 %v423
        %v617 = vpop.xlane.xlu0 %616
        %618 = vadd.xlane.f32.xlu0 %v424
        %v619 = vpop.xlane.xlu0 %618
        %620 = vadd.xlane.f32.xlu0 %v425
        %v621 = vpop.xlane.xlu0 %620
        %622 = vadd.xlane.f32.xlu0 %v426
        %v623 = vpop.xlane.xlu0 %622
        %624 = vadd.xlane.f32.xlu0 %v427
        %v625 = vpop.xlane.xlu0 %624
        %626 = vadd.xlane.f32.xlu0 %v428
        %v627 = vpop.xlane.xlu0 %626
        %628 = vadd.xlane.f32.xlu0 %v429
        %v629 = vpop.xlane.xlu0 %628
        %630 = vadd.xlane.f32.xlu0 %v430
        %v631 = vpop.xlane.xlu0 %630
        %632 = vadd.xlane.f32.xlu0 %v431
        %v633 = vpop.xlane.xlu0 %632
        %634 = vadd.xlane.f32.xlu0 %v432
        %v635 = vpop.xlane.xlu0 %634
        %636 = vadd.xlane.f32.xlu0 %v433
        %v637 = vpop.xlane.xlu0 %636
        %638 = vadd.xlane.f32.xlu0 %v434
        %v639 = vpop.xlane.xlu0 %638
        %640 = vadd.xlane.f32.xlu0 %v435
        %v641 = vpop.xlane.xlu0 %640
        %642 = vadd.xlane.f32.xlu0 %v436
        %v643 = vpop.xlane.xlu0 %642
        %644 = vadd.xlane.f32.xlu0 %v437
        %v645 = vpop.xlane.xlu0 %644
        %646 = vadd.xlane.f32.xlu0 %v438
        %v647 = vpop.xlane.xlu0 %646
        %648 = vadd.xlane.f32.xlu0 %v439
        %v649 = vpop.xlane.xlu0 %648
        %650 = vadd.xlane.f32.xlu0 %v440
        %v651 = vpop.xlane.xlu0 %650
        %652 = vadd.xlane.f32.xlu0 %v441
        %v653 = vpop.xlane.xlu0 %652
        %654 = vadd.xlane.f32.xlu0 %v442
        %v655 = vpop.xlane.xlu0 %654
        %656 = vadd.xlane.f32.xlu0 %v443
        %v657 = vpop.xlane.xlu0 %656
        %658 = vadd.xlane.f32.xlu0 %v444
        %v659 = vpop.xlane.xlu0 %658
        %660 = vadd.xlane.f32.xlu0 %v445
        %v661 = vpop.xlane.xlu0 %660
        %662 = vadd.xlane.f32.xlu0 %v446
        %v663 = vpop.xlane.xlu0 %662
        %664 = vadd.xlane.f32.xlu0 %v447
        %v665 = vpop.xlane.xlu0 %664
        %666 = vadd.xlane.f32.xlu0 %v448
        %v667 = vpop.xlane.xlu0 %666
        %668 = vadd.xlane.f32.xlu0 %v449
        %v669 = vpop.xlane.xlu0 %668
        %670 = vadd.xlane.f32.xlu0 %v450
        %v671 = vpop.xlane.xlu0 %670
        %672 = vadd.xlane.f32.xlu0 %v451
        %v673 = vpop.xlane.xlu0 %672
        %674 = vadd.xlane.f32.xlu0 %v452
        %v675 = vpop.xlane.xlu0 %674
        %676 = vadd.xlane.f32.xlu0 %v453
        %v677 = vpop.xlane.xlu0 %676
        %678 = vadd.xlane.f32.xlu0 %v454
        %v679 = vpop.xlane.xlu0 %678
        %680 = vadd.xlane.f32.xlu0 %v455
        %v681 = vpop.xlane.xlu0 %680
        %682 = vadd.xlane.f32.xlu0 %v456
        %v683 = vpop.xlane.xlu0 %682
        %684 = vadd.xlane.f32.xlu0 %v457
        %v685 = vpop.xlane.xlu0 %684
        %686 = vadd.xlane.f32.xlu0 %v458
        %v687 = vpop.xlane.xlu0 %686
        %688 = vadd.xlane.f32.xlu0 %v459
        %v689 = vpop.xlane.xlu0 %688
        %690 = vadd.xlane.f32.xlu0 %v460
        %v691 = vpop.xlane.xlu0 %690
        %692 = vadd.xlane.f32.xlu0 %v461
        %v693 = vpop.xlane.xlu0 %692
        %694 = vadd.xlane.f32.xlu0 %v462
        %v695 = vpop.xlane.xlu0 %694
        %696 = vadd.xlane.f32.xlu0 %v463
        %v697 = vpop.xlane.xlu0 %696
        %698 = vadd.xlane.f32.xlu0 %v464
        %v699 = vpop.xlane.xlu0 %698
        %700 = vadd.xlane.f32.xlu0 %v465
        %v701 = vpop.xlane.xlu0 %700
        %702 = vadd.xlane.f32.xlu0 %v466
        %v703 = vpop.xlane.xlu0 %702
        %704 = vadd.xlane.f32.xlu0 %v467
        %v705 = vpop.xlane.xlu0 %704
        %706 = vadd.xlane.f32.xlu0 %v468
        %v707 = vpop.xlane.xlu0 %706
        %708 = vadd.xlane.f32.xlu0 %v469
        %v709 = vpop.xlane.xlu0 %708
        %710 = vadd.xlane.f32.xlu0 %v470
        %v711 = vpop.xlane.xlu0 %710
        %712 = vadd.xlane.f32.xlu0 %v471
        %v713 = vpop.xlane.xlu0 %712
        %714 = vadd.xlane.f32.xlu0 %v472
        %v715 = vpop.xlane.xlu0 %714
        %716 = vadd.xlane.f32.xlu0 %v473
        %v717 = vpop.xlane.xlu0 %716
        %718 = vadd.xlane.f32.xlu0 %v474
        %v719 = vpop.xlane.xlu0 %718
        %720 = vadd.xlane.f32.xlu0 %v475
        %v721 = vpop.xlane.xlu0 %720
        %722 = vadd.xlane.f32.xlu0 %v476
        %v723 = vpop.xlane.xlu0 %722
        %724 = vadd.xlane.f32.xlu0 %v477
        %v725 = vpop.xlane.xlu0 %724
        %726 = vadd.xlane.f32.xlu0 %v478
        %v727 = vpop.xlane.xlu0 %726
        %728 = vadd.xlane.f32.xlu0 %v479
        %v729 = vpop.xlane.xlu0 %728
        %730 = vadd.xlane.f32.xlu0 %v480
        %v731 = vpop.xlane.xlu0 %730
        %732 = vadd.xlane.f32.xlu0 %v481
        %v733 = vpop.xlane.xlu0 %732
        %734 = vadd.xlane.f32.xlu0 %v482
        %v735 = vpop.xlane.xlu0 %734
        %736 = vadd.xlane.f32.xlu0 %v483
        %v737 = vpop.xlane.xlu0 %736
        %738 = vadd.xlane.f32.xlu0 %v484
        %v739 = vpop.xlane.xlu0 %738
        %740 = vadd.xlane.f32.xlu0 %v485
        %v741 = vpop.xlane.xlu0 %740
        %v870 = vlaneseq
        %v871 = vand.u32 %v870, 127
        %v872 = vperm.slane %v487, %v871
        %v873 = vadd.s32 %v871, 4294967288
        %v874 = vperm.slane %v489, %v873
        %vm875 = vcmask 130112
        %v876 = vsel %vm875, %v874, %v872
        %v877 = vadd.s32 %v871, 4294967280
        %v878 = vperm.slane %v491, %v877
        %vm879 = vcmask 195712
        %v880 = vsel %vm879, %v878, %v876
        %v881 = vadd.s32 %v871, 4294967272
        %v882 = vperm.slane %v493, %v881
        %vm883 = vcmask 261312
        %v884 = vsel %vm883, %v882, %v880
        %v885 = vadd.s32 %v871, 4294967264
        %v886 = vperm.slane %v495, %v885
        %vm887 = vcmask 326912
        %v888 = vsel %vm887, %v886, %v884
        %v889 = vadd.s32 %v871, 4294967256
        %v890 = vperm.slane %v497, %v889
        %vm891 = vcmask 392512
        %v892 = vsel %vm891, %v890, %v888
        %v893 = vadd.s32 %v871, 4294967248
        %v894 = vperm.slane %v499, %v893
        %vm895 = vcmask 458112
        %v896 = vsel %vm895, %v894, %v892
        %v897 = vadd.s32 %v871, 4294967240
        %v898 = vperm.slane %v501, %v897
        %vm899 = vcmask 523712
        %v900 = vsel %vm899, %v898, %v896
        %v901 = vadd.s32 %v871, 4294967232
        %v902 = vperm.slane %v503, %v901
        %vm903 = vcmask 589312
        %v904 = vsel %vm903, %v902, %v900
        %v905 = vadd.s32 %v871, 4294967224
        %v906 = vperm.slane %v505, %v905
        %vm907 = vcmask 654912
        %v908 = vsel %vm907, %v906, %v904
        %v909 = vadd.s32 %v871, 4294967216
        %v910 = vperm.slane %v507, %v909
        %vm911 = vcmask 720512
        %v912 = vsel %vm911, %v910, %v908
        %v913 = vadd.s32 %v871, 4294967208
        %v914 = vperm.slane %v509, %v913
        %vm915 = vcmask 786112
        %v916 = vsel %vm915, %v914, %v912
        %v917 = vadd.s32 %v871, 4294967200
        %v918 = vperm.slane %v511, %v917
        %vm919 = vcmask 851712
        %v920 = vsel %vm919, %v918, %v916
        %v921 = vadd.s32 %v871, 4294967192
        %v922 = vperm.slane %v513, %v921
        %vm923 = vcmask 917312
        %v924 = vsel %vm923, %v922, %v920
        %v925 = vadd.s32 %v871, 4294967184
        %v926 = vperm.slane %v515, %v925
        %vm927 = vcmask 982912
        %v928 = vsel %vm927, %v926, %v924
        %v929 = vadd.s32 %v871, 4294967176
        %v930 = vperm.slane %v517, %v929
        %vm931 = vcmask 1048512
        %v932 = vsel %vm931, %v930, %v928
        %v933 = vperm.slane %v519, %v871
        %v934 = vperm.slane %v521, %v873
        %v935 = vsel %vm875, %v934, %v933
        %v936 = vperm.slane %v523, %v877
        %v937 = vsel %vm879, %v936, %v935
        %v938 = vperm.slane %v525, %v881
        %v939 = vsel %vm883, %v938, %v937
        %v940 = vperm.slane %v527, %v885
        %v941 = vsel %vm887, %v940, %v939
        %v942 = vperm.slane %v529, %v889
        %v943 = vsel %vm891, %v942, %v941
        %v944 = vperm.slane %v531, %v893
        %v945 = vsel %vm895, %v944, %v943
        %v946 = vperm.slane %v533, %v897
        %v947 = vsel %vm899, %v946, %v945
        %v948 = vperm.slane %v535, %v901
        %v949 = vsel %vm903, %v948, %v947
        %v950 = vperm.slane %v537, %v905
        %v951 = vsel %vm907, %v950, %v949
        %v952 = vperm.slane %v539, %v909
        %v953 = vsel %vm911, %v952, %v951
        %v954 = vperm.slane %v541, %v913
        %v955 = vsel %vm915, %v954, %v953
        %v956 = vperm.slane %v543, %v917
        %v957 = vsel %vm919, %v956, %v955
        %v958 = vperm.slane %v545, %v921
        %v959 = vsel %vm923, %v958, %v957
        %v960 = vperm.slane %v547, %v925
        %v961 = vsel %vm927, %v960, %v959
        %v962 = vperm.slane %v549, %v929
        %v963 = vsel %vm931, %v962, %v961
        %v964 = vperm.slane %v551, %v871
        %v965 = vperm.slane %v553, %v873
        %v966 = vsel %vm875, %v965, %v964
        %v967 = vperm.slane %v555, %v877
        %v968 = vsel %vm879, %v967, %v966
        %v969 = vperm.slane %v557, %v881
        %v970 = vsel %vm883, %v969, %v968
        %v971 = vperm.slane %v559, %v885
        %v972 = vsel %vm887, %v971, %v970
        %v973 = vperm.slane %v561, %v889
        %v974 = vsel %vm891, %v973, %v972
        %v975 = vperm.slane %v563, %v893
        %v976 = vsel %vm895, %v975, %v974
        %v977 = vperm.slane %v565, %v897
        %v978 = vsel %vm899, %v977, %v976
        %v979 = vperm.slane %v567, %v901
        %v980 = vsel %vm903, %v979, %v978
        %v981 = vperm.slane %v569, %v905
        %v982 = vsel %vm907, %v981, %v980
        %v983 = vperm.slane %v571, %v909
        %v984 = vsel %vm911, %v983, %v982
        %v985 = vperm.slane %v573, %v913
        %v986 = vsel %vm915, %v985, %v984
        %v987 = vperm.slane %v575, %v917
        %v988 = vsel %vm919, %v987, %v986
        %v989 = vperm.slane %v577, %v921
        %v990 = vsel %vm923, %v989, %v988
        %v991 = vperm.slane %v579, %v925
        %v992 = vsel %vm927, %v991, %v990
        %v993 = vperm.slane %v581, %v929
        %v994 = vsel %vm931, %v993, %v992
        %v995 = vperm.slane %v583, %v871
        %v996 = vperm.slane %v585, %v873
        %v997 = vsel %vm875, %v996, %v995
        %v998 = vperm.slane %v587, %v877
        %v999 = vsel %vm879, %v998, %v997
        %v1000 = vperm.slane %v589, %v881
        %v1001 = vsel %vm883, %v1000, %v999
        %v1002 = vperm.slane %v591, %v885
        %v1003 = vsel %vm887, %v1002, %v1001
        %v1004 = vperm.slane %v593, %v889
        %v1005 = vsel %vm891, %v1004, %v1003
        %v1006 = vperm.slane %v595, %v893
        %v1007 = vsel %vm895, %v1006, %v1005
        %v1008 = vperm.slane %v597, %v897
        %v1009 = vsel %vm899, %v1008, %v1007
        %v1010 = vperm.slane %v599, %v901
        %v1011 = vsel %vm903, %v1010, %v1009
        %v1012 = vperm.slane %v601, %v905
        %v1013 = vsel %vm907, %v1012, %v1011
        %v1014 = vperm.slane %v603, %v909
        %v1015 = vsel %vm911, %v1014, %v1013
        %v1016 = vperm.slane %v605, %v913
        %v1017 = vsel %vm915, %v1016, %v1015
        %v1018 = vperm.slane %v607, %v917
        %v1019 = vsel %vm919, %v1018, %v1017
        %v1020 = vperm.slane %v609, %v921
        %v1021 = vsel %vm923, %v1020, %v1019
        %v1022 = vperm.slane %v611, %v925
        %v1023 = vsel %vm927, %v1022, %v1021
        %v1024 = vperm.slane %v613, %v929
        %v1025 = vsel %vm931, %v1024, %v1023
        %v1026 = vperm.slane %v615, %v871
        %v1027 = vperm.slane %v617, %v873
        %v1028 = vsel %vm875, %v1027, %v1026
        %v1029 = vperm.slane %v619, %v877
        %v1030 = vsel %vm879, %v1029, %v1028
        %v1031 = vperm.slane %v621, %v881
        %v1032 = vsel %vm883, %v1031, %v1030
        %v1033 = vperm.slane %v623, %v885
        %v1034 = vsel %vm887, %v1033, %v1032
        %v1035 = vperm.slane %v625, %v889
        %v1036 = vsel %vm891, %v1035, %v1034
        %v1037 = vperm.slane %v627, %v893
        %v1038 = vsel %vm895, %v1037, %v1036
        %v1039 = vperm.slane %v629, %v897
        %v1040 = vsel %vm899, %v1039, %v1038
        %v1041 = vperm.slane %v631, %v901
        %v1042 = vsel %vm903, %v1041, %v1040
        %v1043 = vperm.slane %v633, %v905
        %v1044 = vsel %vm907, %v1043, %v1042
        %v1045 = vperm.slane %v635, %v909
        %v1046 = vsel %vm911, %v1045, %v1044
        %v1047 = vperm.slane %v637, %v913
        %v1048 = vsel %vm915, %v1047, %v1046
        %v1049 = vperm.slane %v639, %v917
        %v1050 = vsel %vm919, %v1049, %v1048
        %v1051 = vperm.slane %v641, %v921
        %v1052 = vsel %vm923, %v1051, %v1050
        %v1053 = vperm.slane %v643, %v925
        %v1054 = vsel %vm927, %v1053, %v1052
        %v1055 = vperm.slane %v645, %v929
        %v1056 = vsel %vm931, %v1055, %v1054
        %v1057 = vperm.slane %v647, %v871
        %v1058 = vperm.slane %v649, %v873
        %v1059 = vsel %vm875, %v1058, %v1057
        %v1060 = vperm.slane %v651, %v877
        %v1061 = vsel %vm879, %v1060, %v1059
        %v1062 = vperm.slane %v653, %v881
        %v1063 = vsel %vm883, %v1062, %v1061
        %v1064 = vperm.slane %v655, %v885
        %v1065 = vsel %vm887, %v1064, %v1063
        %v1066 = vperm.slane %v657, %v889
        %v1067 = vsel %vm891, %v1066, %v1065
        %v1068 = vperm.slane %v659, %v893
        %v1069 = vsel %vm895, %v1068, %v1067
        %v1070 = vperm.slane %v661, %v897
        %v1071 = vsel %vm899, %v1070, %v1069
        %v1072 = vperm.slane %v663, %v901
        %v1073 = vsel %vm903, %v1072, %v1071
        %v1074 = vperm.slane %v665, %v905
        %v1075 = vsel %vm907, %v1074, %v1073
        %v1076 = vperm.slane %v667, %v909
        %v1077 = vsel %vm911, %v1076, %v1075
        %v1078 = vperm.slane %v669, %v913
        %v1079 = vsel %vm915, %v1078, %v1077
        %v1080 = vperm.slane %v671, %v917
        %v1081 = vsel %vm919, %v1080, %v1079
        %v1082 = vperm.slane %v673, %v921
        %v1083 = vsel %vm923, %v1082, %v1081
        %v1084 = vperm.slane %v675, %v925
        %v1085 = vsel %vm927, %v1084, %v1083
        %v1086 = vperm.slane %v677, %v929
        %v1087 = vsel %vm931, %v1086, %v1085
        %v1088 = vperm.slane %v679, %v871
        %v1089 = vperm.slane %v681, %v873
        %v1090 = vsel %vm875, %v1089, %v1088
        %v1091 = vperm.slane %v683, %v877
        %v1092 = vsel %vm879, %v1091, %v1090
        %v1093 = vperm.slane %v685, %v881
        %v1094 = vsel %vm883, %v1093, %v1092
        %v1095 = vperm.slane %v687, %v885
        %v1096 = vsel %vm887, %v1095, %v1094
        %v1097 = vperm.slane %v689, %v889
        %v1098 = vsel %vm891, %v1097, %v1096
        %v1099 = vperm.slane %v691, %v893
        %v1100 = vsel %vm895, %v1099, %v1098
        %v1101 = vperm.slane %v693, %v897
        %v1102 = vsel %vm899, %v1101, %v1100
        %v1103 = vperm.slane %v695, %v901
        %v1104 = vsel %vm903, %v1103, %v1102
        %v1105 = vperm.slane %v697, %v905
        %v1106 = vsel %vm907, %v1105, %v1104
        %v1107 = vperm.slane %v699, %v909
        %v1108 = vsel %vm911, %v1107, %v1106
        %v1109 = vperm.slane %v701, %v913
        %v1110 = vsel %vm915, %v1109, %v1108
        %v1111 = vperm.slane %v703, %v917
        %v1112 = vsel %vm919, %v1111, %v1110
        %v1113 = vperm.slane %v705, %v921
        %v1114 = vsel %vm923, %v1113, %v1112
        %v1115 = vperm.slane %v707, %v925
        %v1116 = vsel %vm927, %v1115, %v1114
        %v1117 = vperm.slane %v709, %v929
        %v1118 = vsel %vm931, %v1117, %v1116
        %v1119 = vperm.slane %v711, %v871
        %v1120 = vperm.slane %v713, %v873
        %v1121 = vsel %vm875, %v1120, %v1119
        %v1122 = vperm.slane %v715, %v877
        %v1123 = vsel %vm879, %v1122, %v1121
        %v1124 = vperm.slane %v717, %v881
        %v1125 = vsel %vm883, %v1124, %v1123
        %v1126 = vperm.slane %v719, %v885
        %v1127 = vsel %vm887, %v1126, %v1125
        %v1128 = vperm.slane %v721, %v889
        %v1129 = vsel %vm891, %v1128, %v1127
        %v1130 = vperm.slane %v723, %v893
        %v1131 = vsel %vm895, %v1130, %v1129
        %v1132 = vperm.slane %v725, %v897
        %v1133 = vsel %vm899, %v1132, %v1131
        %v1134 = vperm.slane %v727, %v901
        %v1135 = vsel %vm903, %v1134, %v1133
        %v1136 = vperm.slane %v729, %v905
        %v1137 = vsel %vm907, %v1136, %v1135
        %v1138 = vperm.slane %v731, %v909
        %v1139 = vsel %vm911, %v1138, %v1137
        %v1140 = vperm.slane %v733, %v913
        %v1141 = vsel %vm915, %v1140, %v1139
        %v1142 = vperm.slane %v735, %v917
        %v1143 = vsel %vm919, %v1142, %v1141
        %v1144 = vperm.slane %v737, %v921
        %v1145 = vsel %vm923, %v1144, %v1143
        %v1146 = vperm.slane %v739, %v925
        %v1147 = vsel %vm927, %v1146, %v1145
        %v1148 = vperm.slane %v741, %v929
        %v1149 = vsel %vm931, %v1148, %v1147
        %vm1150 = vcmask 1041409
        %v1151 = vsel %vm1150, %v963, %v932
        %vm1152 = vcmask 1042434
        %v1153 = vsel %vm1152, %v994, %v1151
        %vm1154 = vcmask 1043459
        %v1155 = vsel %vm1154, %v1025, %v1153
        %vm1156 = vcmask 1044484
        %v1157 = vsel %vm1156, %v1056, %v1155
        %vm1158 = vcmask 1045509
        %v1159 = vsel %vm1158, %v1087, %v1157
        %vm1160 = vcmask 1046534
        %v1161 = vsel %vm1160, %v1118, %v1159
        %vm1162 = vcmask 1047559
        %v1163 = vsel %vm1162, %v1149, %v1161
        %1165 = vmax.xlane.f32.xlu0 %v1163
        %v1166 = vpop.xlane.xlu0 %1165
        %v1168 = vperm.slane %v1166, 0
        %v1169 = vperm.slane %v1166, 1
        %v1170 = vperm.slane %v1166, 2
        %v1171 = vperm.slane %v1166, 3
        %v1172 = vperm.slane %v1166, 4
        %v1173 = vperm.slane %v1166, 5
        %v1174 = vperm.slane %v1166, 6
        %v1175 = vperm.slane %v1166, 7
        %v1184 = vsub.f32 %v487, %v1168
        %v1185 = vsub.f32 %v489, %v1168
        %v1186 = vsub.f32 %v491, %v1168
        %v1187 = vsub.f32 %v493, %v1168
        %v1188 = vsub.f32 %v495, %v1168
        %v1189 = vsub.f32 %v497, %v1168
        %v1190 = vsub.f32 %v499, %v1168
        %v1191 = vsub.f32 %v501, %v1168
        %v1192 = vsub.f32 %v503, %v1168
        %v1193 = vsub.f32 %v505, %v1168
        %v1194 = vsub.f32 %v507, %v1168
        %v1195 = vsub.f32 %v509, %v1168
        %v1196 = vsub.f32 %v511, %v1168
        %v1197 = vsub.f32 %v513, %v1168
        %v1198 = vsub.f32 %v515, %v1168
        %v1199 = vsub.f32 %v517, %v1168
        %v1200 = vsub.f32 %v519, %v1169
        %v1201 = vsub.f32 %v521, %v1169
        %v1202 = vsub.f32 %v523, %v1169
        %v1203 = vsub.f32 %v525, %v1169
        %v1204 = vsub.f32 %v527, %v1169
        %v1205 = vsub.f32 %v529, %v1169
        %v1206 = vsub.f32 %v531, %v1169
        %v1207 = vsub.f32 %v533, %v1169
        %v1208 = vsub.f32 %v535, %v1169
        %v1209 = vsub.f32 %v537, %v1169
        %v1210 = vsub.f32 %v539, %v1169
        %v1211 = vsub.f32 %v541, %v1169
        %v1212 = vsub.f32 %v543, %v1169
        %v1213 = vsub.f32 %v545, %v1169
        %v1214 = vsub.f32 %v547, %v1169
        %v1215 = vsub.f32 %v549, %v1169
        %v1216 = vsub.f32 %v551, %v1170
        %v1217 = vsub.f32 %v553, %v1170
        %v1218 = vsub.f32 %v555, %v1170
        %v1219 = vsub.f32 %v557, %v1170
        %v1220 = vsub.f32 %v559, %v1170
        %v1221 = vsub.f32 %v561, %v1170
        %v1222 = vsub.f32 %v563, %v1170
        %v1223 = vsub.f32 %v565, %v1170
        %v1224 = vsub.f32 %v567, %v1170
        %v1225 = vsub.f32 %v569, %v1170
        %v1226 = vsub.f32 %v571, %v1170
        %v1227 = vsub.f32 %v573, %v1170
        %v1228 = vsub.f32 %v575, %v1170
        %v1229 = vsub.f32 %v577, %v1170
        %v1230 = vsub.f32 %v579, %v1170
        %v1231 = vsub.f32 %v581, %v1170
        %v1232 = vsub.f32 %v583, %v1171
        %v1233 = vsub.f32 %v585, %v1171
        %v1234 = vsub.f32 %v587, %v1171
        %v1235 = vsub.f32 %v589, %v1171
        %v1236 = vsub.f32 %v591, %v1171
        %v1237 = vsub.f32 %v593, %v1171
        %v1238 = vsub.f32 %v595, %v1171
        %v1239 = vsub.f32 %v597, %v1171
        %v1240 = vsub.f32 %v599, %v1171
        %v1241 = vsub.f32 %v601, %v1171
        %v1242 = vsub.f32 %v603, %v1171
        %v1243 = vsub.f32 %v605, %v1171
        %v1244 = vsub.f32 %v607, %v1171
        %v1245 = vsub.f32 %v609, %v1171
        %v1246 = vsub.f32 %v611, %v1171
        %v1247 = vsub.f32 %v613, %v1171
        %v1248 = vsub.f32 %v615, %v1172
        %v1249 = vsub.f32 %v617, %v1172
        %v1250 = vsub.f32 %v619, %v1172
        %v1251 = vsub.f32 %v621, %v1172
        %v1252 = vsub.f32 %v623, %v1172
        %v1253 = vsub.f32 %v625, %v1172
        %v1254 = vsub.f32 %v627, %v1172
        %v1255 = vsub.f32 %v629, %v1172
        %v1256 = vsub.f32 %v631, %v1172
        %v1257 = vsub.f32 %v633, %v1172
        %v1258 = vsub.f32 %v635, %v1172
        %v1259 = vsub.f32 %v637, %v1172
        %v1260 = vsub.f32 %v639, %v1172
        %v1261 = vsub.f32 %v641, %v1172
        %v1262 = vsub.f32 %v643, %v1172
        %v1263 = vsub.f32 %v645, %v1172
        %v1264 = vsub.f32 %v647, %v1173
        %v1265 = vsub.f32 %v649, %v1173
        %v1266 = vsub.f32 %v651, %v1173
        %v1267 = vsub.f32 %v653, %v1173
        %v1268 = vsub.f32 %v655, %v1173
        %v1269 = vsub.f32 %v657, %v1173
        %v1270 = vsub.f32 %v659, %v1173
        %v1271 = vsub.f32 %v661, %v1173
        %v1272 = vsub.f32 %v663, %v1173
        %v1273 = vsub.f32 %v665, %v1173
        %v1274 = vsub.f32 %v667, %v1173
        %v1275 = vsub.f32 %v669, %v1173
        %v1276 = vsub.f32 %v671, %v1173
        %v1277 = vsub.f32 %v673, %v1173
        %v1278 = vsub.f32 %v675, %v1173
        %v1279 = vsub.f32 %v677, %v1173
        %v1280 = vsub.f32 %v679, %v1174
        %v1281 = vsub.f32 %v681, %v1174
        %v1282 = vsub.f32 %v683, %v1174
        %v1283 = vsub.f32 %v685, %v1174
        %v1284 = vsub.f32 %v687, %v1174
        %v1285 = vsub.f32 %v689, %v1174
        %v1286 = vsub.f32 %v691, %v1174
        %v1287 = vsub.f32 %v693, %v1174
        %v1288 = vsub.f32 %v695, %v1174
        %v1289 = vsub.f32 %v697, %v1174
        %v1290 = vsub.f32 %v699, %v1174
        %v1291 = vsub.f32 %v701, %v1174
        %v1292 = vsub.f32 %v703, %v1174
        %v1293 = vsub.f32 %v705, %v1174
        %v1294 = vsub.f32 %v707, %v1174
        %v1295 = vsub.f32 %v709, %v1174
        %v1296 = vsub.f32 %v711, %v1175
        %v1297 = vsub.f32 %v713, %v1175
        %v1298 = vsub.f32 %v715, %v1175
        %v1299 = vsub.f32 %v717, %v1175
        %v1300 = vsub.f32 %v719, %v1175
        %v1301 = vsub.f32 %v721, %v1175
        %v1302 = vsub.f32 %v723, %v1175
        %v1303 = vsub.f32 %v725, %v1175
        %v1304 = vsub.f32 %v727, %v1175
        %v1305 = vsub.f32 %v729, %v1175
        %v1306 = vsub.f32 %v731, %v1175
        %v1307 = vsub.f32 %v733, %v1175
        %v1308 = vsub.f32 %v735, %v1175
        %v1309 = vsub.f32 %v737, %v1175
        %v1310 = vsub.f32 %v739, %v1175
        %v1311 = vsub.f32 %v741, %v1175
        %v1312 = vmul.f32 %v1184, 1.442695
        %v1313 = vpow.pop %v1312
        %v1314 = vmul.f32 %v1185, 1.442695
        %v1315 = vpow.pop %v1314
        %v1316 = vmul.f32 %v1186, 1.442695
        %v1317 = vpow.pop %v1316
        %v1318 = vmul.f32 %v1187, 1.442695
        %v1319 = vpow.pop %v1318
        %v1320 = vmul.f32 %v1188, 1.442695
        %v1321 = vpow.pop %v1320
        %v1322 = vmul.f32 %v1189, 1.442695
        %v1323 = vpow.pop %v1322
        %v1324 = vmul.f32 %v1190, 1.442695
        %v1325 = vpow.pop %v1324
        %v1326 = vmul.f32 %v1191, 1.442695
        %v1327 = vpow.pop %v1326
        %v1328 = vmul.f32 %v1192, 1.442695
        %v1329 = vpow.pop %v1328
        %v1330 = vmul.f32 %v1193, 1.442695
        %v1331 = vpow.pop %v1330
        %v1332 = vmul.f32 %v1194, 1.442695
        %v1333 = vpow.pop %v1332
        %v1334 = vmul.f32 %v1195, 1.442695
        %v1335 = vpow.pop %v1334
        %v1336 = vmul.f32 %v1196, 1.442695
        %v1337 = vpow.pop %v1336
        %v1338 = vmul.f32 %v1197, 1.442695
        %v1339 = vpow.pop %v1338
        %v1340 = vmul.f32 %v1198, 1.442695
        %v1341 = vpow.pop %v1340
        %v1342 = vmul.f32 %v1199, 1.442695
        %v1343 = vpow.pop %v1342
        %v1344 = vmul.f32 %v1200, 1.442695
        %v1345 = vpow.pop %v1344
        %v1346 = vmul.f32 %v1201, 1.442695
        %v1347 = vpow.pop %v1346
        %v1348 = vmul.f32 %v1202, 1.442695
        %v1349 = vpow.pop %v1348
        %v1350 = vmul.f32 %v1203, 1.442695
        %v1351 = vpow.pop %v1350
        %v1352 = vmul.f32 %v1204, 1.442695
        %v1353 = vpow.pop %v1352
        %v1354 = vmul.f32 %v1205, 1.442695
        %v1355 = vpow.pop %v1354
        %v1356 = vmul.f32 %v1206, 1.442695
        %v1357 = vpow.pop %v1356
        %v1358 = vmul.f32 %v1207, 1.442695
        %v1359 = vpow.pop %v1358
        %v1360 = vmul.f32 %v1208, 1.442695
        %v1361 = vpow.pop %v1360
        %v1362 = vmul.f32 %v1209, 1.442695
        %v1363 = vpow.pop %v1362
        %v1364 = vmul.f32 %v1210, 1.442695
        %v1365 = vpow.pop %v1364
        %v1366 = vmul.f32 %v1211, 1.442695
        %v1367 = vpow.pop %v1366
        %v1368 = vmul.f32 %v1212, 1.442695
        %v1369 = vpow.pop %v1368
        %v1370 = vmul.f32 %v1213, 1.442695
        %v1371 = vpow.pop %v1370
        %v1372 = vmul.f32 %v1214, 1.442695
        %v1373 = vpow.pop %v1372
        %v1374 = vmul.f32 %v1215, 1.442695
        %v1375 = vpow.pop %v1374
        %v1376 = vmul.f32 %v1216, 1.442695
        %v1377 = vpow.pop %v1376
        %v1378 = vmul.f32 %v1217, 1.442695
        %v1379 = vpow.pop %v1378
        %v1380 = vmul.f32 %v1218, 1.442695
        %v1381 = vpow.pop %v1380
        %v1382 = vmul.f32 %v1219, 1.442695
        %v1383 = vpow.pop %v1382
        %v1384 = vmul.f32 %v1220, 1.442695
        %v1385 = vpow.pop %v1384
        %v1386 = vmul.f32 %v1221, 1.442695
        %v1387 = vpow.pop %v1386
        %v1388 = vmul.f32 %v1222, 1.442695
        %v1389 = vpow.pop %v1388
        %v1390 = vmul.f32 %v1223, 1.442695
        %v1391 = vpow.pop %v1390
        %v1392 = vmul.f32 %v1224, 1.442695
        %v1393 = vpow.pop %v1392
        %v1394 = vmul.f32 %v1225, 1.442695
        %v1395 = vpow.pop %v1394
        %v1396 = vmul.f32 %v1226, 1.442695
        %v1397 = vpow.pop %v1396
        %v1398 = vmul.f32 %v1227, 1.442695
        %v1399 = vpow.pop %v1398
        %v1400 = vmul.f32 %v1228, 1.442695
        %v1401 = vpow.pop %v1400
        %v1402 = vmul.f32 %v1229, 1.442695
        %v1403 = vpow.pop %v1402
        %v1404 = vmul.f32 %v1230, 1.442695
        %v1405 = vpow.pop %v1404
        %v1406 = vmul.f32 %v1231, 1.442695
        %v1407 = vpow.pop %v1406
        %v1408 = vmul.f32 %v1232, 1.442695
        %v1409 = vpow.pop %v1408
        %v1410 = vmul.f32 %v1233, 1.442695
        %v1411 = vpow.pop %v1410
        %v1412 = vmul.f32 %v1234, 1.442695
        %v1413 = vpow.pop %v1412
        %v1414 = vmul.f32 %v1235, 1.442695
        %v1415 = vpow.pop %v1414
        %v1416 = vmul.f32 %v1236, 1.442695
        %v1417 = vpow.pop %v1416
        %v1418 = vmul.f32 %v1237, 1.442695
        %v1419 = vpow.pop %v1418
        %v1420 = vmul.f32 %v1238, 1.442695
        %v1421 = vpow.pop %v1420
        %v1422 = vmul.f32 %v1239, 1.442695
        %v1423 = vpow.pop %v1422
        %v1424 = vmul.f32 %v1240, 1.442695
        %v1425 = vpow.pop %v1424
        %v1426 = vmul.f32 %v1241, 1.442695
        %v1427 = vpow.pop %v1426
        %v1428 = vmul.f32 %v1242, 1.442695
        %v1429 = vpow.pop %v1428
        %v1430 = vmul.f32 %v1243, 1.442695
        %v1431 = vpow.pop %v1430
        %v1432 = vmul.f32 %v1244, 1.442695
        %v1433 = vpow.pop %v1432
        %v1434 = vmul.f32 %v1245, 1.442695
        %v1435 = vpow.pop %v1434
        %v1436 = vmul.f32 %v1246, 1.442695
        %v1437 = vpow.pop %v1436
        %v1438 = vmul.f32 %v1247, 1.442695
        %v1439 = vpow.pop %v1438
        %v1440 = vmul.f32 %v1248, 1.442695
        %v1441 = vpow.pop %v1440
        %v1442 = vmul.f32 %v1249, 1.442695
        %v1443 = vpow.pop %v1442
        %v1444 = vmul.f32 %v1250, 1.442695
        %v1445 = vpow.pop %v1444
        %v1446 = vmul.f32 %v1251, 1.442695
        %v1447 = vpow.pop %v1446
        %v1448 = vmul.f32 %v1252, 1.442695
        %v1449 = vpow.pop %v1448
        %v1450 = vmul.f32 %v1253, 1.442695
        %v1451 = vpow.pop %v1450
        %v1452 = vmul.f32 %v1254, 1.442695
        %v1453 = vpow.pop %v1452
        %v1454 = vmul.f32 %v1255, 1.442695
        %v1455 = vpow.pop %v1454
        %v1456 = vmul.f32 %v1256, 1.442695
        %v1457 = vpow.pop %v1456
        %v1458 = vmul.f32 %v1257, 1.442695
        %v1459 = vpow.pop %v1458
        %v1460 = vmul.f32 %v1258, 1.442695
        %v1461 = vpow.pop %v1460
        %v1462 = vmul.f32 %v1259, 1.442695
        %v1463 = vpow.pop %v1462
        %v1464 = vmul.f32 %v1260, 1.442695
        %v1465 = vpow.pop %v1464
        %v1466 = vmul.f32 %v1261, 1.442695
        %v1467 = vpow.pop %v1466
        %v1468 = vmul.f32 %v1262, 1.442695
        %v1469 = vpow.pop %v1468
        %v1470 = vmul.f32 %v1263, 1.442695
        %v1471 = vpow.pop %v1470
        %v1472 = vmul.f32 %v1264, 1.442695
        %v1473 = vpow.pop %v1472
        %v1474 = vmul.f32 %v1265, 1.442695
        %v1475 = vpow.pop %v1474
        %v1476 = vmul.f32 %v1266, 1.442695
        %v1477 = vpow.pop %v1476
        %v1478 = vmul.f32 %v1267, 1.442695
        %v1479 = vpow.pop %v1478
        %v1480 = vmul.f32 %v1268, 1.442695
        %v1481 = vpow.pop %v1480
        %v1482 = vmul.f32 %v1269, 1.442695
        %v1483 = vpow.pop %v1482
        %v1484 = vmul.f32 %v1270, 1.442695
        %v1485 = vpow.pop %v1484
        %v1486 = vmul.f32 %v1271, 1.442695
        %v1487 = vpow.pop %v1486
        %v1488 = vmul.f32 %v1272, 1.442695
        %v1489 = vpow.pop %v1488
        %v1490 = vmul.f32 %v1273, 1.442695
        %v1491 = vpow.pop %v1490
        %v1492 = vmul.f32 %v1274, 1.442695
        %v1493 = vpow.pop %v1492
        %v1494 = vmul.f32 %v1275, 1.442695
        %v1495 = vpow.pop %v1494
        %v1496 = vmul.f32 %v1276, 1.442695
        %v1497 = vpow.pop %v1496
        %v1498 = vmul.f32 %v1277, 1.442695
        %v1499 = vpow.pop %v1498
        %v1500 = vmul.f32 %v1278, 1.442695
        %v1501 = vpow.pop %v1500
        %v1502 = vmul.f32 %v1279, 1.442695
        %v1503 = vpow.pop %v1502
        %v1504 = vmul.f32 %v1280, 1.442695
        %v1505 = vpow.pop %v1504
        %v1506 = vmul.f32 %v1281, 1.442695
        %v1507 = vpow.pop %v1506
        %v1508 = vmul.f32 %v1282, 1.442695
        %v1509 = vpow.pop %v1508
        %v1510 = vmul.f32 %v1283, 1.442695
        %v1511 = vpow.pop %v1510
        %v1512 = vmul.f32 %v1284, 1.442695
        %v1513 = vpow.pop %v1512
        %v1514 = vmul.f32 %v1285, 1.442695
        %v1515 = vpow.pop %v1514
        %v1516 = vmul.f32 %v1286, 1.442695
        %v1517 = vpow.pop %v1516
        %v1518 = vmul.f32 %v1287, 1.442695
        %v1519 = vpow.pop %v1518
        %v1520 = vmul.f32 %v1288, 1.442695
        %v1521 = vpow.pop %v1520
        %v1522 = vmul.f32 %v1289, 1.442695
        %v1523 = vpow.pop %v1522
        %v1524 = vmul.f32 %v1290, 1.442695
        %v1525 = vpow.pop %v1524
        %v1526 = vmul.f32 %v1291, 1.442695
        %v1527 = vpow.pop %v1526
        %v1528 = vmul.f32 %v1292, 1.442695
        %v1529 = vpow.pop %v1528
        %v1530 = vmul.f32 %v1293, 1.442695
        %v1531 = vpow.pop %v1530
        %v1532 = vmul.f32 %v1294, 1.442695
        %v1533 = vpow.pop %v1532
        %v1534 = vmul.f32 %v1295, 1.442695
        %v1535 = vpow.pop %v1534
        %v1536 = vmul.f32 %v1296, 1.442695
        %v1537 = vpow.pop %v1536
        %v1538 = vmul.f32 %v1297, 1.442695
        %v1539 = vpow.pop %v1538
        %v1540 = vmul.f32 %v1298, 1.442695
        %v1541 = vpow.pop %v1540
        %v1542 = vmul.f32 %v1299, 1.442695
        %v1543 = vpow.pop %v1542
        %v1544 = vmul.f32 %v1300, 1.442695
        %v1545 = vpow.pop %v1544
        %v1546 = vmul.f32 %v1301, 1.442695
        %v1547 = vpow.pop %v1546
        %v1548 = vmul.f32 %v1302, 1.442695
        %v1549 = vpow.pop %v1548
        %v1550 = vmul.f32 %v1303, 1.442695
        %v1551 = vpow.pop %v1550
        %v1552 = vmul.f32 %v1304, 1.442695
        %v1553 = vpow.pop %v1552
        %v1554 = vmul.f32 %v1305, 1.442695
        %v1555 = vpow.pop %v1554
        %v1556 = vmul.f32 %v1306, 1.442695
        %v1557 = vpow.pop %v1556
        %v1558 = vmul.f32 %v1307, 1.442695
        %v1559 = vpow.pop %v1558
        %v1560 = vmul.f32 %v1308, 1.442695
        %v1561 = vpow.pop %v1560
        %v1562 = vmul.f32 %v1309, 1.442695
        %v1563 = vpow.pop %v1562
        %v1564 = vmul.f32 %v1310, 1.442695
        %v1565 = vpow.pop %v1564
        %v1566 = vmul.f32 %v1311, 1.442695
        %v1567 = vpow.pop %v1566
        %1696 = vset.pattern.permute.xlu0 0
        %1697 = vperm.xlu0 %1696, %v1313
        %v1698 = vpop.permute.xlu0 %1697
        %1699 = vset.pattern.permute.xlu0 0
        %1700 = vperm.xlu0 %1699, %v1315
        %v1701 = vpop.permute.xlu0 %1700
        %1702 = vset.pattern.permute.xlu0 0
        %1703 = vperm.xlu0 %1702, %v1317
        %v1704 = vpop.permute.xlu0 %1703
        %1705 = vset.pattern.permute.xlu0 0
        %1706 = vperm.xlu0 %1705, %v1319
        %v1707 = vpop.permute.xlu0 %1706
        %1708 = vset.pattern.permute.xlu0 0
        %1709 = vperm.xlu0 %1708, %v1321
        %v1710 = vpop.permute.xlu0 %1709
        %1711 = vset.pattern.permute.xlu0 0
        %1712 = vperm.xlu0 %1711, %v1323
        %v1713 = vpop.permute.xlu0 %1712
        %1714 = vset.pattern.permute.xlu0 0
        %1715 = vperm.xlu0 %1714, %v1325
        %v1716 = vpop.permute.xlu0 %1715
        %1717 = vset.pattern.permute.xlu0 0
        %1718 = vperm.xlu0 %1717, %v1327
        %v1719 = vpop.permute.xlu0 %1718
        %1720 = vset.pattern.permute.xlu0 0
        %1721 = vperm.xlu0 %1720, %v1329
        %v1722 = vpop.permute.xlu0 %1721
        %1723 = vset.pattern.permute.xlu0 0
        %1724 = vperm.xlu0 %1723, %v1331
        %v1725 = vpop.permute.xlu0 %1724
        %1726 = vset.pattern.permute.xlu0 0
        %1727 = vperm.xlu0 %1726, %v1333
        %v1728 = vpop.permute.xlu0 %1727
        %1729 = vset.pattern.permute.xlu0 0
        %1730 = vperm.xlu0 %1729, %v1335
        %v1731 = vpop.permute.xlu0 %1730
        %1732 = vset.pattern.permute.xlu0 0
        %1733 = vperm.xlu0 %1732, %v1337
        %v1734 = vpop.permute.xlu0 %1733
        %1735 = vset.pattern.permute.xlu0 0
        %1736 = vperm.xlu0 %1735, %v1339
        %v1737 = vpop.permute.xlu0 %1736
        %1738 = vset.pattern.permute.xlu0 0
        %1739 = vperm.xlu0 %1738, %v1341
        %v1740 = vpop.permute.xlu0 %1739
        %1741 = vset.pattern.permute.xlu0 0
        %1742 = vperm.xlu0 %1741, %v1343
        %v1743 = vpop.permute.xlu0 %1742
        %1744 = vset.pattern.permute.xlu0 0
        %1745 = vperm.xlu0 %1744, %v1345
        %v1746 = vpop.permute.xlu0 %1745
        %1747 = vset.pattern.permute.xlu0 0
        %1748 = vperm.xlu0 %1747, %v1347
        %v1749 = vpop.permute.xlu0 %1748
        %1750 = vset.pattern.permute.xlu0 0
        %1751 = vperm.xlu0 %1750, %v1349
        %v1752 = vpop.permute.xlu0 %1751
        %1753 = vset.pattern.permute.xlu0 0
        %1754 = vperm.xlu0 %1753, %v1351
        %v1755 = vpop.permute.xlu0 %1754
        %1756 = vset.pattern.permute.xlu0 0
        %1757 = vperm.xlu0 %1756, %v1353
        %v1758 = vpop.permute.xlu0 %1757
        %1759 = vset.pattern.permute.xlu0 0
        %1760 = vperm.xlu0 %1759, %v1355
        %v1761 = vpop.permute.xlu0 %1760
        %1762 = vset.pattern.permute.xlu0 0
        %1763 = vperm.xlu0 %1762, %v1357
        %v1764 = vpop.permute.xlu0 %1763
        %1765 = vset.pattern.permute.xlu0 0
        %1766 = vperm.xlu0 %1765, %v1359
        %v1767 = vpop.permute.xlu0 %1766
        %1768 = vset.pattern.permute.xlu0 0
        %1769 = vperm.xlu0 %1768, %v1361
        %v1770 = vpop.permute.xlu0 %1769
        %1771 = vset.pattern.permute.xlu0 0
        %1772 = vperm.xlu0 %1771, %v1363
        %v1773 = vpop.permute.xlu0 %1772
        %1774 = vset.pattern.permute.xlu0 0
        %1775 = vperm.xlu0 %1774, %v1365
        %v1776 = vpop.permute.xlu0 %1775
        %1777 = vset.pattern.permute.xlu0 0
        %1778 = vperm.xlu0 %1777, %v1367
        %v1779 = vpop.permute.xlu0 %1778
        %1780 = vset.pattern.permute.xlu0 0
        %1781 = vperm.xlu0 %1780, %v1369
        %v1782 = vpop.permute.xlu0 %1781
        %1783 = vset.pattern.permute.xlu0 0
        %1784 = vperm.xlu0 %1783, %v1371
        %v1785 = vpop.permute.xlu0 %1784
        %1786 = vset.pattern.permute.xlu0 0
        %1787 = vperm.xlu0 %1786, %v1373
        %v1788 = vpop.permute.xlu0 %1787
        %1789 = vset.pattern.permute.xlu0 0
        %1790 = vperm.xlu0 %1789, %v1375
        %v1791 = vpop.permute.xlu0 %1790
        %1792 = vset.pattern.permute.xlu0 0
        %1793 = vperm.xlu0 %1792, %v1377
        %v1794 = vpop.permute.xlu0 %1793
        %1795 = vset.pattern.permute.xlu0 0
        %1796 = vperm.xlu0 %1795, %v1379
        %v1797 = vpop.permute.xlu0 %1796
        %1798 = vset.pattern.permute.xlu0 0
        %1799 = vperm.xlu0 %1798, %v1381
        %v1800 = vpop.permute.xlu0 %1799
        %1801 = vset.pattern.permute.xlu0 0
        %1802 = vperm.xlu0 %1801, %v1383
        %v1803 = vpop.permute.xlu0 %1802
        %1804 = vset.pattern.permute.xlu0 0
        %1805 = vperm.xlu0 %1804, %v1385
        %v1806 = vpop.permute.xlu0 %1805
        %1807 = vset.pattern.permute.xlu0 0
        %1808 = vperm.xlu0 %1807, %v1387
        %v1809 = vpop.permute.xlu0 %1808
        %1810 = vset.pattern.permute.xlu0 0
        %1811 = vperm.xlu0 %1810, %v1389
        %v1812 = vpop.permute.xlu0 %1811
        %1813 = vset.pattern.permute.xlu0 0
        %1814 = vperm.xlu0 %1813, %v1391
        %v1815 = vpop.permute.xlu0 %1814
        %1816 = vset.pattern.permute.xlu0 0
        %1817 = vperm.xlu0 %1816, %v1393
        %v1818 = vpop.permute.xlu0 %1817
        %1819 = vset.pattern.permute.xlu0 0
        %1820 = vperm.xlu0 %1819, %v1395
        %v1821 = vpop.permute.xlu0 %1820
        %1822 = vset.pattern.permute.xlu0 0
        %1823 = vperm.xlu0 %1822, %v1397
        %v1824 = vpop.permute.xlu0 %1823
        %1825 = vset.pattern.permute.xlu0 0
        %1826 = vperm.xlu0 %1825, %v1399
        %v1827 = vpop.permute.xlu0 %1826
        %1828 = vset.pattern.permute.xlu0 0
        %1829 = vperm.xlu0 %1828, %v1401
        %v1830 = vpop.permute.xlu0 %1829
        %1831 = vset.pattern.permute.xlu0 0
        %1832 = vperm.xlu0 %1831, %v1403
        %v1833 = vpop.permute.xlu0 %1832
        %1834 = vset.pattern.permute.xlu0 0
        %1835 = vperm.xlu0 %1834, %v1405
        %v1836 = vpop.permute.xlu0 %1835
        %1837 = vset.pattern.permute.xlu0 0
        %1838 = vperm.xlu0 %1837, %v1407
        %v1839 = vpop.permute.xlu0 %1838
        %1840 = vset.pattern.permute.xlu0 0
        %1841 = vperm.xlu0 %1840, %v1409
        %v1842 = vpop.permute.xlu0 %1841
        %1843 = vset.pattern.permute.xlu0 0
        %1844 = vperm.xlu0 %1843, %v1411
        %v1845 = vpop.permute.xlu0 %1844
        %1846 = vset.pattern.permute.xlu0 0
        %1847 = vperm.xlu0 %1846, %v1413
        %v1848 = vpop.permute.xlu0 %1847
        %1849 = vset.pattern.permute.xlu0 0
        %1850 = vperm.xlu0 %1849, %v1415
        %v1851 = vpop.permute.xlu0 %1850
        %1852 = vset.pattern.permute.xlu0 0
        %1853 = vperm.xlu0 %1852, %v1417
        %v1854 = vpop.permute.xlu0 %1853
        %1855 = vset.pattern.permute.xlu0 0
        %1856 = vperm.xlu0 %1855, %v1419
        %v1857 = vpop.permute.xlu0 %1856
        %1858 = vset.pattern.permute.xlu0 0
        %1859 = vperm.xlu0 %1858, %v1421
        %v1860 = vpop.permute.xlu0 %1859
        %1861 = vset.pattern.permute.xlu0 0
        %1862 = vperm.xlu0 %1861, %v1423
        %v1863 = vpop.permute.xlu0 %1862
        %1864 = vset.pattern.permute.xlu0 0
        %1865 = vperm.xlu0 %1864, %v1425
        %v1866 = vpop.permute.xlu0 %1865
        %1867 = vset.pattern.permute.xlu0 0
        %1868 = vperm.xlu0 %1867, %v1427
        %v1869 = vpop.permute.xlu0 %1868
        %1870 = vset.pattern.permute.xlu0 0
        %1871 = vperm.xlu0 %1870, %v1429
        %v1872 = vpop.permute.xlu0 %1871
        %1873 = vset.pattern.permute.xlu0 0
        %1874 = vperm.xlu0 %1873, %v1431
        %v1875 = vpop.permute.xlu0 %1874
        %1876 = vset.pattern.permute.xlu0 0
        %1877 = vperm.xlu0 %1876, %v1433
        %v1878 = vpop.permute.xlu0 %1877
        %1879 = vset.pattern.permute.xlu0 0
        %1880 = vperm.xlu0 %1879, %v1435
        %v1881 = vpop.permute.xlu0 %1880
        %1882 = vset.pattern.permute.xlu0 0
        %1883 = vperm.xlu0 %1882, %v1437
        %v1884 = vpop.permute.xlu0 %1883
        %1885 = vset.pattern.permute.xlu0 0
        %1886 = vperm.xlu0 %1885, %v1439
        %v1887 = vpop.permute.xlu0 %1886
        %1888 = vset.pattern.permute.xlu0 0
        %1889 = vperm.xlu0 %1888, %v1441
        %v1890 = vpop.permute.xlu0 %1889
        %1891 = vset.pattern.permute.xlu0 0
        %1892 = vperm.xlu0 %1891, %v1443
        %v1893 = vpop.permute.xlu0 %1892
        %1894 = vset.pattern.permute.xlu0 0
        %1895 = vperm.xlu0 %1894, %v1445
        %v1896 = vpop.permute.xlu0 %1895
        %1897 = vset.pattern.permute.xlu0 0
        %1898 = vperm.xlu0 %1897, %v1447
        %v1899 = vpop.permute.xlu0 %1898
        %1900 = vset.pattern.permute.xlu0 0
        %1901 = vperm.xlu0 %1900, %v1449
        %v1902 = vpop.permute.xlu0 %1901
        %1903 = vset.pattern.permute.xlu0 0
        %1904 = vperm.xlu0 %1903, %v1451
        %v1905 = vpop.permute.xlu0 %1904
        %1906 = vset.pattern.permute.xlu0 0
        %1907 = vperm.xlu0 %1906, %v1453
        %v1908 = vpop.permute.xlu0 %1907
        %1909 = vset.pattern.permute.xlu0 0
        %1910 = vperm.xlu0 %1909, %v1455
        %v1911 = vpop.permute.xlu0 %1910
        %1912 = vset.pattern.permute.xlu0 0
        %1913 = vperm.xlu0 %1912, %v1457
        %v1914 = vpop.permute.xlu0 %1913
        %1915 = vset.pattern.permute.xlu0 0
        %1916 = vperm.xlu0 %1915, %v1459
        %v1917 = vpop.permute.xlu0 %1916
        %1918 = vset.pattern.permute.xlu0 0
        %1919 = vperm.xlu0 %1918, %v1461
        %v1920 = vpop.permute.xlu0 %1919
        %1921 = vset.pattern.permute.xlu0 0
        %1922 = vperm.xlu0 %1921, %v1463
        %v1923 = vpop.permute.xlu0 %1922
        %1924 = vset.pattern.permute.xlu0 0
        %1925 = vperm.xlu0 %1924, %v1465
        %v1926 = vpop.permute.xlu0 %1925
        %1927 = vset.pattern.permute.xlu0 0
        %1928 = vperm.xlu0 %1927, %v1467
        %v1929 = vpop.permute.xlu0 %1928
        %1930 = vset.pattern.permute.xlu0 0
        %1931 = vperm.xlu0 %1930, %v1469
        %v1932 = vpop.permute.xlu0 %1931
        %1933 = vset.pattern.permute.xlu0 0
        %1934 = vperm.xlu0 %1933, %v1471
        %v1935 = vpop.permute.xlu0 %1934
        %1936 = vset.pattern.permute.xlu0 0
        %1937 = vperm.xlu0 %1936, %v1473
        %v1938 = vpop.permute.xlu0 %1937
        %1939 = vset.pattern.permute.xlu0 0
        %1940 = vperm.xlu0 %1939, %v1475
        %v1941 = vpop.permute.xlu0 %1940
        %1942 = vset.pattern.permute.xlu0 0
        %1943 = vperm.xlu0 %1942, %v1477
        %v1944 = vpop.permute.xlu0 %1943
        %1945 = vset.pattern.permute.xlu0 0
        %1946 = vperm.xlu0 %1945, %v1479
        %v1947 = vpop.permute.xlu0 %1946
        %1948 = vset.pattern.permute.xlu0 0
        %1949 = vperm.xlu0 %1948, %v1481
        %v1950 = vpop.permute.xlu0 %1949
        %1951 = vset.pattern.permute.xlu0 0
        %1952 = vperm.xlu0 %1951, %v1483
        %v1953 = vpop.permute.xlu0 %1952
        %1954 = vset.pattern.permute.xlu0 0
        %1955 = vperm.xlu0 %1954, %v1485
        %v1956 = vpop.permute.xlu0 %1955
        %1957 = vset.pattern.permute.xlu0 0
        %1958 = vperm.xlu0 %1957, %v1487
        %v1959 = vpop.permute.xlu0 %1958
        %1960 = vset.pattern.permute.xlu0 0
        %1961 = vperm.xlu0 %1960, %v1489
        %v1962 = vpop.permute.xlu0 %1961
        %1963 = vset.pattern.permute.xlu0 0
        %1964 = vperm.xlu0 %1963, %v1491
        %v1965 = vpop.permute.xlu0 %1964
        %1966 = vset.pattern.permute.xlu0 0
        %1967 = vperm.xlu0 %1966, %v1493
        %v1968 = vpop.permute.xlu0 %1967
        %1969 = vset.pattern.permute.xlu0 0
        %1970 = vperm.xlu0 %1969, %v1495
        %v1971 = vpop.permute.xlu0 %1970
        %1972 = vset.pattern.permute.xlu0 0
        %1973 = vperm.xlu0 %1972, %v1497
        %v1974 = vpop.permute.xlu0 %1973
        %1975 = vset.pattern.permute.xlu0 0
        %1976 = vperm.xlu0 %1975, %v1499
        %v1977 = vpop.permute.xlu0 %1976
        %1978 = vset.pattern.permute.xlu0 0
        %1979 = vperm.xlu0 %1978, %v1501
        %v1980 = vpop.permute.xlu0 %1979
        %1981 = vset.pattern.permute.xlu0 0
        %1982 = vperm.xlu0 %1981, %v1503
        %v1983 = vpop.permute.xlu0 %1982
        %1984 = vset.pattern.permute.xlu0 0
        %1985 = vperm.xlu0 %1984, %v1505
        %v1986 = vpop.permute.xlu0 %1985
        %1987 = vset.pattern.permute.xlu0 0
        %1988 = vperm.xlu0 %1987, %v1507
        %v1989 = vpop.permute.xlu0 %1988
        %1990 = vset.pattern.permute.xlu0 0
        %1991 = vperm.xlu0 %1990, %v1509
        %v1992 = vpop.permute.xlu0 %1991
        %1993 = vset.pattern.permute.xlu0 0
        %1994 = vperm.xlu0 %1993, %v1511
        %v1995 = vpop.permute.xlu0 %1994
        %1996 = vset.pattern.permute.xlu0 0
        %1997 = vperm.xlu0 %1996, %v1513
        %v1998 = vpop.permute.xlu0 %1997
        %1999 = vset.pattern.permute.xlu0 0
        %2000 = vperm.xlu0 %1999, %v1515
        %v2001 = vpop.permute.xlu0 %2000
        %2002 = vset.pattern.permute.xlu0 0
        %2003 = vperm.xlu0 %2002, %v1517
        %v2004 = vpop.permute.xlu0 %2003
        %2005 = vset.pattern.permute.xlu0 0
        %2006 = vperm.xlu0 %2005, %v1519
        %v2007 = vpop.permute.xlu0 %2006
        %2008 = vset.pattern.permute.xlu0 0
        %2009 = vperm.xlu0 %2008, %v1521
        %v2010 = vpop.permute.xlu0 %2009
        %2011 = vset.pattern.permute.xlu0 0
        %2012 = vperm.xlu0 %2011, %v1523
        %v2013 = vpop.permute.xlu0 %2012
        %2014 = vset.pattern.permute.xlu0 0
        %2015 = vperm.xlu0 %2014, %v1525
        %v2016 = vpop.permute.xlu0 %2015
        %2017 = vset.pattern.permute.xlu0 0
        %2018 = vperm.xlu0 %2017, %v1527
        %v2019 = vpop.permute.xlu0 %2018
        %2020 = vset.pattern.permute.xlu0 0
        %2021 = vperm.xlu0 %2020, %v1529
        %v2022 = vpop.permute.xlu0 %2021
        %2023 = vset.pattern.permute.xlu0 0
        %2024 = vperm.xlu0 %2023, %v1531
        %v2025 = vpop.permute.xlu0 %2024
        %2026 = vset.pattern.permute.xlu0 0
        %2027 = vperm.xlu0 %2026, %v1533
        %v2028 = vpop.permute.xlu0 %2027
        %2029 = vset.pattern.permute.xlu0 0
        %2030 = vperm.xlu0 %2029, %v1535
        %v2031 = vpop.permute.xlu0 %2030
        %2032 = vset.pattern.permute.xlu0 0
        %2033 = vperm.xlu0 %2032, %v1537
        %v2034 = vpop.permute.xlu0 %2033
        %2035 = vset.pattern.permute.xlu0 0
        %2036 = vperm.xlu0 %2035, %v1539
        %v2037 = vpop.permute.xlu0 %2036
        %2038 = vset.pattern.permute.xlu0 0
        %2039 = vperm.xlu0 %2038, %v1541
        %v2040 = vpop.permute.xlu0 %2039
        %2041 = vset.pattern.permute.xlu0 0
        %2042 = vperm.xlu0 %2041, %v1543
        %v2043 = vpop.permute.xlu0 %2042
        %2044 = vset.pattern.permute.xlu0 0
        %2045 = vperm.xlu0 %2044, %v1545
        %v2046 = vpop.permute.xlu0 %2045
        %2047 = vset.pattern.permute.xlu0 0
        %2048 = vperm.xlu0 %2047, %v1547
        %v2049 = vpop.permute.xlu0 %2048
        %2050 = vset.pattern.permute.xlu0 0
        %2051 = vperm.xlu0 %2050, %v1549
        %v2052 = vpop.permute.xlu0 %2051
        %2053 = vset.pattern.permute.xlu0 0
        %2054 = vperm.xlu0 %2053, %v1551
        %v2055 = vpop.permute.xlu0 %2054
        %2056 = vset.pattern.permute.xlu0 0
        %2057 = vperm.xlu0 %2056, %v1553
        %v2058 = vpop.permute.xlu0 %2057
        %2059 = vset.pattern.permute.xlu0 0
        %2060 = vperm.xlu0 %2059, %v1555
        %v2061 = vpop.permute.xlu0 %2060
        %2062 = vset.pattern.permute.xlu0 0
        %2063 = vperm.xlu0 %2062, %v1557
        %v2064 = vpop.permute.xlu0 %2063
        %2065 = vset.pattern.permute.xlu0 0
        %2066 = vperm.xlu0 %2065, %v1559
        %v2067 = vpop.permute.xlu0 %2066
        %2068 = vset.pattern.permute.xlu0 0
        %2069 = vperm.xlu0 %2068, %v1561
        %v2070 = vpop.permute.xlu0 %2069
        %2071 = vset.pattern.permute.xlu0 0
        %2072 = vperm.xlu0 %2071, %v1563
        %v2073 = vpop.permute.xlu0 %2072
        %2074 = vset.pattern.permute.xlu0 0
        %2075 = vperm.xlu0 %2074, %v1565
        %v2076 = vpop.permute.xlu0 %2075
        %2077 = vset.pattern.permute.xlu0 0
        %2078 = vperm.xlu0 %2077, %v1567
        %v2079 = vpop.permute.xlu0 %2078
        %v2080 = vperm.slane %v1698, %v871
        %v2081 = vperm.slane %v1701, %v873
        %v2082 = vsel %vm875, %v2081, %v2080
        %v2083 = vperm.slane %v1704, %v877
        %v2084 = vsel %vm879, %v2083, %v2082
        %v2085 = vperm.slane %v1707, %v881
        %v2086 = vsel %vm883, %v2085, %v2084
        %v2087 = vperm.slane %v1710, %v885
        %v2088 = vsel %vm887, %v2087, %v2086
        %v2089 = vperm.slane %v1713, %v889
        %v2090 = vsel %vm891, %v2089, %v2088
        %v2091 = vperm.slane %v1716, %v893
        %v2092 = vsel %vm895, %v2091, %v2090
        %v2093 = vperm.slane %v1719, %v897
        %v2094 = vsel %vm899, %v2093, %v2092
        %v2095 = vperm.slane %v1722, %v901
        %v2096 = vsel %vm903, %v2095, %v2094
        %v2097 = vperm.slane %v1725, %v905
        %v2098 = vsel %vm907, %v2097, %v2096
        %v2099 = vperm.slane %v1728, %v909
        %v2100 = vsel %vm911, %v2099, %v2098
        %v2101 = vperm.slane %v1731, %v913
        %v2102 = vsel %vm915, %v2101, %v2100
        %v2103 = vperm.slane %v1734, %v917
        %v2104 = vsel %vm919, %v2103, %v2102
        %v2105 = vperm.slane %v1737, %v921
        %v2106 = vsel %vm923, %v2105, %v2104
        %v2107 = vperm.slane %v1740, %v925
        %v2108 = vsel %vm927, %v2107, %v2106
        %v2109 = vperm.slane %v1743, %v929
        %v2110 = vsel %vm931, %v2109, %v2108
        %v2111 = vperm.slane %v1746, %v871
        %v2112 = vperm.slane %v1749, %v873
        %v2113 = vsel %vm875, %v2112, %v2111
        %v2114 = vperm.slane %v1752, %v877
        %v2115 = vsel %vm879, %v2114, %v2113
        %v2116 = vperm.slane %v1755, %v881
        %v2117 = vsel %vm883, %v2116, %v2115
        %v2118 = vperm.slane %v1758, %v885
        %v2119 = vsel %vm887, %v2118, %v2117
        %v2120 = vperm.slane %v1761, %v889
        %v2121 = vsel %vm891, %v2120, %v2119
        %v2122 = vperm.slane %v1764, %v893
        %v2123 = vsel %vm895, %v2122, %v2121
        %v2124 = vperm.slane %v1767, %v897
        %v2125 = vsel %vm899, %v2124, %v2123
        %v2126 = vperm.slane %v1770, %v901
        %v2127 = vsel %vm903, %v2126, %v2125
        %v2128 = vperm.slane %v1773, %v905
        %v2129 = vsel %vm907, %v2128, %v2127
        %v2130 = vperm.slane %v1776, %v909
        %v2131 = vsel %vm911, %v2130, %v2129
        %v2132 = vperm.slane %v1779, %v913
        %v2133 = vsel %vm915, %v2132, %v2131
        %v2134 = vperm.slane %v1782, %v917
        %v2135 = vsel %vm919, %v2134, %v2133
        %v2136 = vperm.slane %v1785, %v921
        %v2137 = vsel %vm923, %v2136, %v2135
        %v2138 = vperm.slane %v1788, %v925
        %v2139 = vsel %vm927, %v2138, %v2137
        %v2140 = vperm.slane %v1791, %v929
        %v2141 = vsel %vm931, %v2140, %v2139
        %v2142 = vperm.slane %v1794, %v871
        %v2143 = vperm.slane %v1797, %v873
        %v2144 = vsel %vm875, %v2143, %v2142
        %v2145 = vperm.slane %v1800, %v877
        %v2146 = vsel %vm879, %v2145, %v2144
        %v2147 = vperm.slane %v1803, %v881
        %v2148 = vsel %vm883, %v2147, %v2146
        %v2149 = vperm.slane %v1806, %v885
        %v2150 = vsel %vm887, %v2149, %v2148
        %v2151 = vperm.slane %v1809, %v889
        %v2152 = vsel %vm891, %v2151, %v2150
        %v2153 = vperm.slane %v1812, %v893
        %v2154 = vsel %vm895, %v2153, %v2152
        %v2155 = vperm.slane %v1815, %v897
        %v2156 = vsel %vm899, %v2155, %v2154
        %v2157 = vperm.slane %v1818, %v901
        %v2158 = vsel %vm903, %v2157, %v2156
        %v2159 = vperm.slane %v1821, %v905
        %v2160 = vsel %vm907, %v2159, %v2158
        %v2161 = vperm.slane %v1824, %v909
        %v2162 = vsel %vm911, %v2161, %v2160
        %v2163 = vperm.slane %v1827, %v913
        %v2164 = vsel %vm915, %v2163, %v2162
        %v2165 = vperm.slane %v1830, %v917
        %v2166 = vsel %vm919, %v2165, %v2164
        %v2167 = vperm.slane %v1833, %v921
        %v2168 = vsel %vm923, %v2167, %v2166
        %v2169 = vperm.slane %v1836, %v925
        %v2170 = vsel %vm927, %v2169, %v2168
        %v2171 = vperm.slane %v1839, %v929
        %v2172 = vsel %vm931, %v2171, %v2170
        %v2173 = vperm.slane %v1842, %v871
        %v2174 = vperm.slane %v1845, %v873
        %v2175 = vsel %vm875, %v2174, %v2173
        %v2176 = vperm.slane %v1848, %v877
        %v2177 = vsel %vm879, %v2176, %v2175
        %v2178 = vperm.slane %v1851, %v881
        %v2179 = vsel %vm883, %v2178, %v2177
        %v2180 = vperm.slane %v1854, %v885
        %v2181 = vsel %vm887, %v2180, %v2179
        %v2182 = vperm.slane %v1857, %v889
        %v2183 = vsel %vm891, %v2182, %v2181
        %v2184 = vperm.slane %v1860, %v893
        %v2185 = vsel %vm895, %v2184, %v2183
        %v2186 = vperm.slane %v1863, %v897
        %v2187 = vsel %vm899, %v2186, %v2185
        %v2188 = vperm.slane %v1866, %v901
        %v2189 = vsel %vm903, %v2188, %v2187
        %v2190 = vperm.slane %v1869, %v905
        %v2191 = vsel %vm907, %v2190, %v2189
        %v2192 = vperm.slane %v1872, %v909
        %v2193 = vsel %vm911, %v2192, %v2191
        %v2194 = vperm.slane %v1875, %v913
        %v2195 = vsel %vm915, %v2194, %v2193
        %v2196 = vperm.slane %v1878, %v917
        %v2197 = vsel %vm919, %v2196, %v2195
        %v2198 = vperm.slane %v1881, %v921
        %v2199 = vsel %vm923, %v2198, %v2197
        %v2200 = vperm.slane %v1884, %v925
        %v2201 = vsel %vm927, %v2200, %v2199
        %v2202 = vperm.slane %v1887, %v929
        %v2203 = vsel %vm931, %v2202, %v2201
        %v2204 = vperm.slane %v1890, %v871
        %v2205 = vperm.slane %v1893, %v873
        %v2206 = vsel %vm875, %v2205, %v2204
        %v2207 = vperm.slane %v1896, %v877
        %v2208 = vsel %vm879, %v2207, %v2206
        %v2209 = vperm.slane %v1899, %v881
        %v2210 = vsel %vm883, %v2209, %v2208
        %v2211 = vperm.slane %v1902, %v885
        %v2212 = vsel %vm887, %v2211, %v2210
        %v2213 = vperm.slane %v1905, %v889
        %v2214 = vsel %vm891, %v2213, %v2212
        %v2215 = vperm.slane %v1908, %v893
        %v2216 = vsel %vm895, %v2215, %v2214
        %v2217 = vperm.slane %v1911, %v897
        %v2218 = vsel %vm899, %v2217, %v2216
        %v2219 = vperm.slane %v1914, %v901
        %v2220 = vsel %vm903, %v2219, %v2218
        %v2221 = vperm.slane %v1917, %v905
        %v2222 = vsel %vm907, %v2221, %v2220
        %v2223 = vperm.slane %v1920, %v909
        %v2224 = vsel %vm911, %v2223, %v2222
        %v2225 = vperm.slane %v1923, %v913
        %v2226 = vsel %vm915, %v2225, %v2224
        %v2227 = vperm.slane %v1926, %v917
        %v2228 = vsel %vm919, %v2227, %v2226
        %v2229 = vperm.slane %v1929, %v921
        %v2230 = vsel %vm923, %v2229, %v2228
        %v2231 = vperm.slane %v1932, %v925
        %v2232 = vsel %vm927, %v2231, %v2230
        %v2233 = vperm.slane %v1935, %v929
        %v2234 = vsel %vm931, %v2233, %v2232
        %v2235 = vperm.slane %v1938, %v871
        %v2236 = vperm.slane %v1941, %v873
        %v2237 = vsel %vm875, %v2236, %v2235
        %v2238 = vperm.slane %v1944, %v877
        %v2239 = vsel %vm879, %v2238, %v2237
        %v2240 = vperm.slane %v1947, %v881
        %v2241 = vsel %vm883, %v2240, %v2239
        %v2242 = vperm.slane %v1950, %v885
        %v2243 = vsel %vm887, %v2242, %v2241
        %v2244 = vperm.slane %v1953, %v889
        %v2245 = vsel %vm891, %v2244, %v2243
        %v2246 = vperm.slane %v1956, %v893
        %v2247 = vsel %vm895, %v2246, %v2245
        %v2248 = vperm.slane %v1959, %v897
        %v2249 = vsel %vm899, %v2248, %v2247
        %v2250 = vperm.slane %v1962, %v901
        %v2251 = vsel %vm903, %v2250, %v2249
        %v2252 = vperm.slane %v1965, %v905
        %v2253 = vsel %vm907, %v2252, %v2251
        %v2254 = vperm.slane %v1968, %v909
        %v2255 = vsel %vm911, %v2254, %v2253
        %v2256 = vperm.slane %v1971, %v913
        %v2257 = vsel %vm915, %v2256, %v2255
        %v2258 = vperm.slane %v1974, %v917
        %v2259 = vsel %vm919, %v2258, %v2257
        %v2260 = vperm.slane %v1977, %v921
        %v2261 = vsel %vm923, %v2260, %v2259
        %v2262 = vperm.slane %v1980, %v925
        %v2263 = vsel %vm927, %v2262, %v2261
        %v2264 = vperm.slane %v1983, %v929
        %v2265 = vsel %vm931, %v2264, %v2263
        %v2266 = vperm.slane %v1986, %v871
        %v2267 = vperm.slane %v1989, %v873
        %v2268 = vsel %vm875, %v2267, %v2266
        %v2269 = vperm.slane %v1992, %v877
        %v2270 = vsel %vm879, %v2269, %v2268
        %v2271 = vperm.slane %v1995, %v881
        %v2272 = vsel %vm883, %v2271, %v2270
        %v2273 = vperm.slane %v1998, %v885
        %v2274 = vsel %vm887, %v2273, %v2272
        %v2275 = vperm.slane %v2001, %v889
        %v2276 = vsel %vm891, %v2275, %v2274
        %v2277 = vperm.slane %v2004, %v893
        %v2278 = vsel %vm895, %v2277, %v2276
        %v2279 = vperm.slane %v2007, %v897
        %v2280 = vsel %vm899, %v2279, %v2278
        %v2281 = vperm.slane %v2010, %v901
        %v2282 = vsel %vm903, %v2281, %v2280
        %v2283 = vperm.slane %v2013, %v905
        %v2284 = vsel %vm907, %v2283, %v2282
        %v2285 = vperm.slane %v2016, %v909
        %v2286 = vsel %vm911, %v2285, %v2284
        %v2287 = vperm.slane %v2019, %v913
        %v2288 = vsel %vm915, %v2287, %v2286
        %v2289 = vperm.slane %v2022, %v917
        %v2290 = vsel %vm919, %v2289, %v2288
        %v2291 = vperm.slane %v2025, %v921
        %v2292 = vsel %vm923, %v2291, %v2290
        %v2293 = vperm.slane %v2028, %v925
        %v2294 = vsel %vm927, %v2293, %v2292
        %v2295 = vperm.slane %v2031, %v929
        %v2296 = vsel %vm931, %v2295, %v2294
        %v2297 = vperm.slane %v2034, %v871
        %v2298 = vperm.slane %v2037, %v873
        %v2299 = vsel %vm875, %v2298, %v2297
        %v2300 = vperm.slane %v2040, %v877
        %v2301 = vsel %vm879, %v2300, %v2299
        %v2302 = vperm.slane %v2043, %v881
        %v2303 = vsel %vm883, %v2302, %v2301
        %v2304 = vperm.slane %v2046, %v885
        %v2305 = vsel %vm887, %v2304, %v2303
        %v2306 = vperm.slane %v2049, %v889
        %v2307 = vsel %vm891, %v2306, %v2305
        %v2308 = vperm.slane %v2052, %v893
        %v2309 = vsel %vm895, %v2308, %v2307
        %v2310 = vperm.slane %v2055, %v897
        %v2311 = vsel %vm899, %v2310, %v2309
        %v2312 = vperm.slane %v2058, %v901
        %v2313 = vsel %vm903, %v2312, %v2311
        %v2314 = vperm.slane %v2061, %v905
        %v2315 = vsel %vm907, %v2314, %v2313
        %v2316 = vperm.slane %v2064, %v909
        %v2317 = vsel %vm911, %v2316, %v2315
        %v2318 = vperm.slane %v2067, %v913
        %v2319 = vsel %vm915, %v2318, %v2317
        %v2320 = vperm.slane %v2070, %v917
        %v2321 = vsel %vm919, %v2320, %v2319
        %v2322 = vperm.slane %v2073, %v921
        %v2323 = vsel %vm923, %v2322, %v2321
        %v2324 = vperm.slane %v2076, %v925
        %v2325 = vsel %vm927, %v2324, %v2323
        %v2326 = vperm.slane %v2079, %v929
        %v2327 = vsel %vm931, %v2326, %v2325
        %v2328 = vsel %vm1150, %v2141, %v2110
        %v2329 = vsel %vm1152, %v2172, %v2328
        %v2330 = vsel %vm1154, %v2203, %v2329
        %v2331 = vsel %vm1156, %v2234, %v2330
        %v2332 = vsel %vm1158, %v2265, %v2331
        %v2333 = vsel %vm1160, %v2296, %v2332
        %v2334 = vsel %vm1162, %v2327, %v2333
        %2336 = vadd.xlane.f32.xlu0 %v2334
        %v2337 = vpop.xlane.xlu0 %2336
        %v2338 = vrcp.pop %v2337
        %v2339 = vmul.f32 %v2337, %v2338
        %v2340 = vsub.f32 1.0, %v2339
        %v2341 = vmul.f32 %v2338, %v2340
        %v2342 = vadd.f32 %v2338, %v2341
        %vm2343 = vweird.f32 %v2337
        %vm2344 = vweird.f32 %v2338
        %vm2345 = vmor %vm2343, %vm2344
        %v2346 = vsel %vm2345, %v2338, %v2342
        %v2347 = vand.u32 2147483647, %v2337
        %vm2348 = vcmp.eq.f32.partialorder %v2347, 8.507059e+37
        %v2349 = vand.u32 %v2337, 2147483648
        %v2350 = vor.u32 1.1754944e-38, %v2349
        %v2351 = vsel %vm2348, %v2350, %v2346
        %v2352 = vmul.f32 1.0, %v2351
        %v2354 = vperm.slane %v2352, 0
        %v2355 = vperm.slane %v2352, 1
        %v2356 = vperm.slane %v2352, 2
        %v2357 = vperm.slane %v2352, 3
        %v2358 = vperm.slane %v2352, 4
        %v2359 = vperm.slane %v2352, 5
        %v2360 = vperm.slane %v2352, 6
        %v2361 = vperm.slane %v2352, 7
        %v2370 = vmul.f32 %v1313, %v2354
        %v2371 = vmul.f32 %v1315, %v2354
        %v2372 = vmul.f32 %v1317, %v2354
        %v2373 = vmul.f32 %v1319, %v2354
        %v2374 = vmul.f32 %v1321, %v2354
        %v2375 = vmul.f32 %v1323, %v2354
        %v2376 = vmul.f32 %v1325, %v2354
        %v2377 = vmul.f32 %v1327, %v2354
        %v2378 = vmul.f32 %v1329, %v2354
        %v2379 = vmul.f32 %v1331, %v2354
        %v2380 = vmul.f32 %v1333, %v2354
        %v2381 = vmul.f32 %v1335, %v2354
        %v2382 = vmul.f32 %v1337, %v2354
        %v2383 = vmul.f32 %v1339, %v2354
        %v2384 = vmul.f32 %v1341, %v2354
        %v2385 = vmul.f32 %v1343, %v2354
        %v2386 = vmul.f32 %v1345, %v2355
        %v2387 = vmul.f32 %v1347, %v2355
        %v2388 = vmul.f32 %v1349, %v2355
        %v2389 = vmul.f32 %v1351, %v2355
        %v2390 = vmul.f32 %v1353, %v2355
        %v2391 = vmul.f32 %v1355, %v2355
        %v2392 = vmul.f32 %v1357, %v2355
        %v2393 = vmul.f32 %v1359, %v2355
        %v2394 = vmul.f32 %v1361, %v2355
        %v2395 = vmul.f32 %v1363, %v2355
        %v2396 = vmul.f32 %v1365, %v2355
        %v2397 = vmul.f32 %v1367, %v2355
        %v2398 = vmul.f32 %v1369, %v2355
        %v2399 = vmul.f32 %v1371, %v2355
        %v2400 = vmul.f32 %v1373, %v2355
        %v2401 = vmul.f32 %v1375, %v2355
        %v2402 = vmul.f32 %v1377, %v2356
        %v2403 = vmul.f32 %v1379, %v2356
        %v2404 = vmul.f32 %v1381, %v2356
        %v2405 = vmul.f32 %v1383, %v2356
        %v2406 = vmul.f32 %v1385, %v2356
        %v2407 = vmul.f32 %v1387, %v2356
        %v2408 = vmul.f32 %v1389, %v2356
        %v2409 = vmul.f32 %v1391, %v2356
        %v2410 = vmul.f32 %v1393, %v2356
        %v2411 = vmul.f32 %v1395, %v2356
        %v2412 = vmul.f32 %v1397, %v2356
        %v2413 = vmul.f32 %v1399, %v2356
        %v2414 = vmul.f32 %v1401, %v2356
        %v2415 = vmul.f32 %v1403, %v2356
        %v2416 = vmul.f32 %v1405, %v2356
        %v2417 = vmul.f32 %v1407, %v2356
        %v2418 = vmul.f32 %v1409, %v2357
        %v2419 = vmul.f32 %v1411, %v2357
        %v2420 = vmul.f32 %v1413, %v2357
        %v2421 = vmul.f32 %v1415, %v2357
        %v2422 = vmul.f32 %v1417, %v2357
        %v2423 = vmul.f32 %v1419, %v2357
        %v2424 = vmul.f32 %v1421, %v2357
        %v2425 = vmul.f32 %v1423, %v2357
        %v2426 = vmul.f32 %v1425, %v2357
        %v2427 = vmul.f32 %v1427, %v2357
        %v2428 = vmul.f32 %v1429, %v2357
        %v2429 = vmul.f32 %v1431, %v2357
        %v2430 = vmul.f32 %v1433, %v2357
        %v2431 = vmul.f32 %v1435, %v2357
        %v2432 = vmul.f32 %v1437, %v2357
        %v2433 = vmul.f32 %v1439, %v2357
        %v2434 = vmul.f32 %v1441, %v2358
        %v2435 = vmul.f32 %v1443, %v2358
        %v2436 = vmul.f32 %v1445, %v2358
        %v2437 = vmul.f32 %v1447, %v2358
        %v2438 = vmul.f32 %v1449, %v2358
        %v2439 = vmul.f32 %v1451, %v2358
        %v2440 = vmul.f32 %v1453, %v2358
        %v2441 = vmul.f32 %v1455, %v2358
        %v2442 = vmul.f32 %v1457, %v2358
        %v2443 = vmul.f32 %v1459, %v2358
        %v2444 = vmul.f32 %v1461, %v2358
        %v2445 = vmul.f32 %v1463, %v2358
        %v2446 = vmul.f32 %v1465, %v2358
        %v2447 = vmul.f32 %v1467, %v2358
        %v2448 = vmul.f32 %v1469, %v2358
        %v2449 = vmul.f32 %v1471, %v2358
        %v2450 = vmul.f32 %v1473, %v2359
        %v2451 = vmul.f32 %v1475, %v2359
        %v2452 = vmul.f32 %v1477, %v2359
        %v2453 = vmul.f32 %v1479, %v2359
        %v2454 = vmul.f32 %v1481, %v2359
        %v2455 = vmul.f32 %v1483, %v2359
        %v2456 = vmul.f32 %v1485, %v2359
        %v2457 = vmul.f32 %v1487, %v2359
        %v2458 = vmul.f32 %v1489, %v2359
        %v2459 = vmul.f32 %v1491, %v2359
        %v2460 = vmul.f32 %v1493, %v2359
        %v2461 = vmul.f32 %v1495, %v2359
        %v2462 = vmul.f32 %v1497, %v2359
        %v2463 = vmul.f32 %v1499, %v2359
        %v2464 = vmul.f32 %v1501, %v2359
        %v2465 = vmul.f32 %v1503, %v2359
        %v2466 = vmul.f32 %v1505, %v2360
        %v2467 = vmul.f32 %v1507, %v2360
        %v2468 = vmul.f32 %v1509, %v2360
        %v2469 = vmul.f32 %v1511, %v2360
        %v2470 = vmul.f32 %v1513, %v2360
        %v2471 = vmul.f32 %v1515, %v2360
        %v2472 = vmul.f32 %v1517, %v2360
        %v2473 = vmul.f32 %v1519, %v2360
        %v2474 = vmul.f32 %v1521, %v2360
        %v2475 = vmul.f32 %v1523, %v2360
        %v2476 = vmul.f32 %v1525, %v2360
        %v2477 = vmul.f32 %v1527, %v2360
        %v2478 = vmul.f32 %v1529, %v2360
        %v2479 = vmul.f32 %v1531, %v2360
        %v2480 = vmul.f32 %v1533, %v2360
        %v2481 = vmul.f32 %v1535, %v2360
        %v2482 = vmul.f32 %v1537, %v2361
        %v2483 = vmul.f32 %v1539, %v2361
        %v2484 = vmul.f32 %v1541, %v2361
        %v2485 = vmul.f32 %v1543, %v2361
        %v2486 = vmul.f32 %v1545, %v2361
        %v2487 = vmul.f32 %v1547, %v2361
        %v2488 = vmul.f32 %v1549, %v2361
        %v2489 = vmul.f32 %v1551, %v2361
        %v2490 = vmul.f32 %v1553, %v2361
        %v2491 = vmul.f32 %v1555, %v2361
        %v2492 = vmul.f32 %v1557, %v2361
        %v2493 = vmul.f32 %v1559, %v2361
        %v2494 = vmul.f32 %v1561, %v2361
        %v2495 = vmul.f32 %v1563, %v2361
        %v2496 = vmul.f32 %v1565, %v2361
        %v2497 = vmul.f32 %v1567, %v2361
        %2626 = vset.pattern.permute.xlu0 0
        %2627 = vperm.xlu0 %2626, %v2370
        %v2628 = vpop.permute.xlu0 %2627
        %2629 = vset.pattern.permute.xlu0 0
        %2630 = vperm.xlu0 %2629, %v2371
        %v2631 = vpop.permute.xlu0 %2630
        %2632 = vset.pattern.permute.xlu0 0
        %2633 = vperm.xlu0 %2632, %v2372
        %v2634 = vpop.permute.xlu0 %2633
        %2635 = vset.pattern.permute.xlu0 0
        %2636 = vperm.xlu0 %2635, %v2373
        %v2637 = vpop.permute.xlu0 %2636
        %2638 = vset.pattern.permute.xlu0 0
        %2639 = vperm.xlu0 %2638, %v2374
        %v2640 = vpop.permute.xlu0 %2639
        %2641 = vset.pattern.permute.xlu0 0
        %2642 = vperm.xlu0 %2641, %v2375
        %v2643 = vpop.permute.xlu0 %2642
        %2644 = vset.pattern.permute.xlu0 0
        %2645 = vperm.xlu0 %2644, %v2376
        %v2646 = vpop.permute.xlu0 %2645
        %2647 = vset.pattern.permute.xlu0 0
        %2648 = vperm.xlu0 %2647, %v2377
        %v2649 = vpop.permute.xlu0 %2648
        %2650 = vset.pattern.permute.xlu0 0
        %2651 = vperm.xlu0 %2650, %v2378
        %v2652 = vpop.permute.xlu0 %2651
        %2653 = vset.pattern.permute.xlu0 0
        %2654 = vperm.xlu0 %2653, %v2379
        %v2655 = vpop.permute.xlu0 %2654
        %2656 = vset.pattern.permute.xlu0 0
        %2657 = vperm.xlu0 %2656, %v2380
        %v2658 = vpop.permute.xlu0 %2657
        %2659 = vset.pattern.permute.xlu0 0
        %2660 = vperm.xlu0 %2659, %v2381
        %v2661 = vpop.permute.xlu0 %2660
        %2662 = vset.pattern.permute.xlu0 0
        %2663 = vperm.xlu0 %2662, %v2382
        %v2664 = vpop.permute.xlu0 %2663
        %2665 = vset.pattern.permute.xlu0 0
        %2666 = vperm.xlu0 %2665, %v2383
        %v2667 = vpop.permute.xlu0 %2666
        %2668 = vset.pattern.permute.xlu0 0
        %2669 = vperm.xlu0 %2668, %v2384
        %v2670 = vpop.permute.xlu0 %2669
        %2671 = vset.pattern.permute.xlu0 0
        %2672 = vperm.xlu0 %2671, %v2385
        %v2673 = vpop.permute.xlu0 %2672
        %2674 = vset.pattern.permute.xlu0 0
        %2675 = vperm.xlu0 %2674, %v2386
        %v2676 = vpop.permute.xlu0 %2675
        %2677 = vset.pattern.permute.xlu0 0
        %2678 = vperm.xlu0 %2677, %v2387
        %v2679 = vpop.permute.xlu0 %2678
        %2680 = vset.pattern.permute.xlu0 0
        %2681 = vperm.xlu0 %2680, %v2388
        %v2682 = vpop.permute.xlu0 %2681
        %2683 = vset.pattern.permute.xlu0 0
        %2684 = vperm.xlu0 %2683, %v2389
        %v2685 = vpop.permute.xlu0 %2684
        %2686 = vset.pattern.permute.xlu0 0
        %2687 = vperm.xlu0 %2686, %v2390
        %v2688 = vpop.permute.xlu0 %2687
        %2689 = vset.pattern.permute.xlu0 0
        %2690 = vperm.xlu0 %2689, %v2391
        %v2691 = vpop.permute.xlu0 %2690
        %2692 = vset.pattern.permute.xlu0 0
        %2693 = vperm.xlu0 %2692, %v2392
        %v2694 = vpop.permute.xlu0 %2693
        %2695 = vset.pattern.permute.xlu0 0
        %2696 = vperm.xlu0 %2695, %v2393
        %v2697 = vpop.permute.xlu0 %2696
        %2698 = vset.pattern.permute.xlu0 0
        %2699 = vperm.xlu0 %2698, %v2394
        %v2700 = vpop.permute.xlu0 %2699
        %2701 = vset.pattern.permute.xlu0 0
        %2702 = vperm.xlu0 %2701, %v2395
        %v2703 = vpop.permute.xlu0 %2702
        %2704 = vset.pattern.permute.xlu0 0
        %2705 = vperm.xlu0 %2704, %v2396
        %v2706 = vpop.permute.xlu0 %2705
        %2707 = vset.pattern.permute.xlu0 0
        %2708 = vperm.xlu0 %2707, %v2397
        %v2709 = vpop.permute.xlu0 %2708
        %2710 = vset.pattern.permute.xlu0 0
        %2711 = vperm.xlu0 %2710, %v2398
        %v2712 = vpop.permute.xlu0 %2711
        %2713 = vset.pattern.permute.xlu0 0
        %2714 = vperm.xlu0 %2713, %v2399
        %v2715 = vpop.permute.xlu0 %2714
        %2716 = vset.pattern.permute.xlu0 0
        %2717 = vperm.xlu0 %2716, %v2400
        %v2718 = vpop.permute.xlu0 %2717
        %2719 = vset.pattern.permute.xlu0 0
        %2720 = vperm.xlu0 %2719, %v2401
        %v2721 = vpop.permute.xlu0 %2720
        %2722 = vset.pattern.permute.xlu0 0
        %2723 = vperm.xlu0 %2722, %v2402
        %v2724 = vpop.permute.xlu0 %2723
        %2725 = vset.pattern.permute.xlu0 0
        %2726 = vperm.xlu0 %2725, %v2403
        %v2727 = vpop.permute.xlu0 %2726
        %2728 = vset.pattern.permute.xlu0 0
        %2729 = vperm.xlu0 %2728, %v2404
        %v2730 = vpop.permute.xlu0 %2729
        %2731 = vset.pattern.permute.xlu0 0
        %2732 = vperm.xlu0 %2731, %v2405
        %v2733 = vpop.permute.xlu0 %2732
        %2734 = vset.pattern.permute.xlu0 0
        %2735 = vperm.xlu0 %2734, %v2406
        %v2736 = vpop.permute.xlu0 %2735
        %2737 = vset.pattern.permute.xlu0 0
        %2738 = vperm.xlu0 %2737, %v2407
        %v2739 = vpop.permute.xlu0 %2738
        %2740 = vset.pattern.permute.xlu0 0
        %2741 = vperm.xlu0 %2740, %v2408
        %v2742 = vpop.permute.xlu0 %2741
        %2743 = vset.pattern.permute.xlu0 0
        %2744 = vperm.xlu0 %2743, %v2409
        %v2745 = vpop.permute.xlu0 %2744
        %2746 = vset.pattern.permute.xlu0 0
        %2747 = vperm.xlu0 %2746, %v2410
        %v2748 = vpop.permute.xlu0 %2747
        %2749 = vset.pattern.permute.xlu0 0
        %2750 = vperm.xlu0 %2749, %v2411
        %v2751 = vpop.permute.xlu0 %2750
        %2752 = vset.pattern.permute.xlu0 0
        %2753 = vperm.xlu0 %2752, %v2412
        %v2754 = vpop.permute.xlu0 %2753
        %2755 = vset.pattern.permute.xlu0 0
        %2756 = vperm.xlu0 %2755, %v2413
        %v2757 = vpop.permute.xlu0 %2756
        %2758 = vset.pattern.permute.xlu0 0
        %2759 = vperm.xlu0 %2758, %v2414
        %v2760 = vpop.permute.xlu0 %2759
        %2761 = vset.pattern.permute.xlu0 0
        %2762 = vperm.xlu0 %2761, %v2415
        %v2763 = vpop.permute.xlu0 %2762
        %2764 = vset.pattern.permute.xlu0 0
        %2765 = vperm.xlu0 %2764, %v2416
        %v2766 = vpop.permute.xlu0 %2765
        %2767 = vset.pattern.permute.xlu0 0
        %2768 = vperm.xlu0 %2767, %v2417
        %v2769 = vpop.permute.xlu0 %2768
        %2770 = vset.pattern.permute.xlu0 0
        %2771 = vperm.xlu0 %2770, %v2418
        %v2772 = vpop.permute.xlu0 %2771
        %2773 = vset.pattern.permute.xlu0 0
        %2774 = vperm.xlu0 %2773, %v2419
        %v2775 = vpop.permute.xlu0 %2774
        %2776 = vset.pattern.permute.xlu0 0
        %2777 = vperm.xlu0 %2776, %v2420
        %v2778 = vpop.permute.xlu0 %2777
        %2779 = vset.pattern.permute.xlu0 0
        %2780 = vperm.xlu0 %2779, %v2421
        %v2781 = vpop.permute.xlu0 %2780
        %2782 = vset.pattern.permute.xlu0 0
        %2783 = vperm.xlu0 %2782, %v2422
        %v2784 = vpop.permute.xlu0 %2783
        %2785 = vset.pattern.permute.xlu0 0
        %2786 = vperm.xlu0 %2785, %v2423
        %v2787 = vpop.permute.xlu0 %2786
        %2788 = vset.pattern.permute.xlu0 0
        %2789 = vperm.xlu0 %2788, %v2424
        %v2790 = vpop.permute.xlu0 %2789
        %2791 = vset.pattern.permute.xlu0 0
        %2792 = vperm.xlu0 %2791, %v2425
        %v2793 = vpop.permute.xlu0 %2792
        %2794 = vset.pattern.permute.xlu0 0
        %2795 = vperm.xlu0 %2794, %v2426
        %v2796 = vpop.permute.xlu0 %2795
        %2797 = vset.pattern.permute.xlu0 0
        %2798 = vperm.xlu0 %2797, %v2427
        %v2799 = vpop.permute.xlu0 %2798
        %2800 = vset.pattern.permute.xlu0 0
        %2801 = vperm.xlu0 %2800, %v2428
        %v2802 = vpop.permute.xlu0 %2801
        %2803 = vset.pattern.permute.xlu0 0
        %2804 = vperm.xlu0 %2803, %v2429
        %v2805 = vpop.permute.xlu0 %2804
        %2806 = vset.pattern.permute.xlu0 0
        %2807 = vperm.xlu0 %2806, %v2430
        %v2808 = vpop.permute.xlu0 %2807
        %2809 = vset.pattern.permute.xlu0 0
        %2810 = vperm.xlu0 %2809, %v2431
        %v2811 = vpop.permute.xlu0 %2810
        %2812 = vset.pattern.permute.xlu0 0
        %2813 = vperm.xlu0 %2812, %v2432
        %v2814 = vpop.permute.xlu0 %2813
        %2815 = vset.pattern.permute.xlu0 0
        %2816 = vperm.xlu0 %2815, %v2433
        %v2817 = vpop.permute.xlu0 %2816
        %2818 = vset.pattern.permute.xlu0 0
        %2819 = vperm.xlu0 %2818, %v2434
        %v2820 = vpop.permute.xlu0 %2819
        %2821 = vset.pattern.permute.xlu0 0
        %2822 = vperm.xlu0 %2821, %v2435
        %v2823 = vpop.permute.xlu0 %2822
        %2824 = vset.pattern.permute.xlu0 0
        %2825 = vperm.xlu0 %2824, %v2436
        %v2826 = vpop.permute.xlu0 %2825
        %2827 = vset.pattern.permute.xlu0 0
        %2828 = vperm.xlu0 %2827, %v2437
        %v2829 = vpop.permute.xlu0 %2828
        %2830 = vset.pattern.permute.xlu0 0
        %2831 = vperm.xlu0 %2830, %v2438
        %v2832 = vpop.permute.xlu0 %2831
        %2833 = vset.pattern.permute.xlu0 0
        %2834 = vperm.xlu0 %2833, %v2439
        %v2835 = vpop.permute.xlu0 %2834
        %2836 = vset.pattern.permute.xlu0 0
        %2837 = vperm.xlu0 %2836, %v2440
        %v2838 = vpop.permute.xlu0 %2837
        %2839 = vset.pattern.permute.xlu0 0
        %2840 = vperm.xlu0 %2839, %v2441
        %v2841 = vpop.permute.xlu0 %2840
        %2842 = vset.pattern.permute.xlu0 0
        %2843 = vperm.xlu0 %2842, %v2442
        %v2844 = vpop.permute.xlu0 %2843
        %2845 = vset.pattern.permute.xlu0 0
        %2846 = vperm.xlu0 %2845, %v2443
        %v2847 = vpop.permute.xlu0 %2846
        %2848 = vset.pattern.permute.xlu0 0
        %2849 = vperm.xlu0 %2848, %v2444
        %v2850 = vpop.permute.xlu0 %2849
        %2851 = vset.pattern.permute.xlu0 0
        %2852 = vperm.xlu0 %2851, %v2445
        %v2853 = vpop.permute.xlu0 %2852
        %2854 = vset.pattern.permute.xlu0 0
        %2855 = vperm.xlu0 %2854, %v2446
        %v2856 = vpop.permute.xlu0 %2855
        %2857 = vset.pattern.permute.xlu0 0
        %2858 = vperm.xlu0 %2857, %v2447
        %v2859 = vpop.permute.xlu0 %2858
        %2860 = vset.pattern.permute.xlu0 0
        %2861 = vperm.xlu0 %2860, %v2448
        %v2862 = vpop.permute.xlu0 %2861
        %2863 = vset.pattern.permute.xlu0 0
        %2864 = vperm.xlu0 %2863, %v2449
        %v2865 = vpop.permute.xlu0 %2864
        %2866 = vset.pattern.permute.xlu0 0
        %2867 = vperm.xlu0 %2866, %v2450
        %v2868 = vpop.permute.xlu0 %2867
        %2869 = vset.pattern.permute.xlu0 0
        %2870 = vperm.xlu0 %2869, %v2451
        %v2871 = vpop.permute.xlu0 %2870
        %2872 = vset.pattern.permute.xlu0 0
        %2873 = vperm.xlu0 %2872, %v2452
        %v2874 = vpop.permute.xlu0 %2873
        %2875 = vset.pattern.permute.xlu0 0
        %2876 = vperm.xlu0 %2875, %v2453
        %v2877 = vpop.permute.xlu0 %2876
        %2878 = vset.pattern.permute.xlu0 0
        %2879 = vperm.xlu0 %2878, %v2454
        %v2880 = vpop.permute.xlu0 %2879
        %2881 = vset.pattern.permute.xlu0 0
        %2882 = vperm.xlu0 %2881, %v2455
        %v2883 = vpop.permute.xlu0 %2882
        %2884 = vset.pattern.permute.xlu0 0
        %2885 = vperm.xlu0 %2884, %v2456
        %v2886 = vpop.permute.xlu0 %2885
        %2887 = vset.pattern.permute.xlu0 0
        %2888 = vperm.xlu0 %2887, %v2457
        %v2889 = vpop.permute.xlu0 %2888
        %2890 = vset.pattern.permute.xlu0 0
        %2891 = vperm.xlu0 %2890, %v2458
        %v2892 = vpop.permute.xlu0 %2891
        %2893 = vset.pattern.permute.xlu0 0
        %2894 = vperm.xlu0 %2893, %v2459
        %v2895 = vpop.permute.xlu0 %2894
        %2896 = vset.pattern.permute.xlu0 0
        %2897 = vperm.xlu0 %2896, %v2460
        %v2898 = vpop.permute.xlu0 %2897
        %2899 = vset.pattern.permute.xlu0 0
        %2900 = vperm.xlu0 %2899, %v2461
        %v2901 = vpop.permute.xlu0 %2900
        %2902 = vset.pattern.permute.xlu0 0
        %2903 = vperm.xlu0 %2902, %v2462
        %v2904 = vpop.permute.xlu0 %2903
        %2905 = vset.pattern.permute.xlu0 0
        %2906 = vperm.xlu0 %2905, %v2463
        %v2907 = vpop.permute.xlu0 %2906
        %2908 = vset.pattern.permute.xlu0 0
        %2909 = vperm.xlu0 %2908, %v2464
        %v2910 = vpop.permute.xlu0 %2909
        %2911 = vset.pattern.permute.xlu0 0
        %2912 = vperm.xlu0 %2911, %v2465
        %v2913 = vpop.permute.xlu0 %2912
        %2914 = vset.pattern.permute.xlu0 0
        %2915 = vperm.xlu0 %2914, %v2466
        %v2916 = vpop.permute.xlu0 %2915
        %2917 = vset.pattern.permute.xlu0 0
        %2918 = vperm.xlu0 %2917, %v2467
        %v2919 = vpop.permute.xlu0 %2918
        %2920 = vset.pattern.permute.xlu0 0
        %2921 = vperm.xlu0 %2920, %v2468
        %v2922 = vpop.permute.xlu0 %2921
        %2923 = vset.pattern.permute.xlu0 0
        %2924 = vperm.xlu0 %2923, %v2469
        %v2925 = vpop.permute.xlu0 %2924
        %2926 = vset.pattern.permute.xlu0 0
        %2927 = vperm.xlu0 %2926, %v2470
        %v2928 = vpop.permute.xlu0 %2927
        %2929 = vset.pattern.permute.xlu0 0
        %2930 = vperm.xlu0 %2929, %v2471
        %v2931 = vpop.permute.xlu0 %2930
        %2932 = vset.pattern.permute.xlu0 0
        %2933 = vperm.xlu0 %2932, %v2472
        %v2934 = vpop.permute.xlu0 %2933
        %2935 = vset.pattern.permute.xlu0 0
        %2936 = vperm.xlu0 %2935, %v2473
        %v2937 = vpop.permute.xlu0 %2936
        %2938 = vset.pattern.permute.xlu0 0
        %2939 = vperm.xlu0 %2938, %v2474
        %v2940 = vpop.permute.xlu0 %2939
        %2941 = vset.pattern.permute.xlu0 0
        %2942 = vperm.xlu0 %2941, %v2475
        %v2943 = vpop.permute.xlu0 %2942
        %2944 = vset.pattern.permute.xlu0 0
        %2945 = vperm.xlu0 %2944, %v2476
        %v2946 = vpop.permute.xlu0 %2945
        %2947 = vset.pattern.permute.xlu0 0
        %2948 = vperm.xlu0 %2947, %v2477
        %v2949 = vpop.permute.xlu0 %2948
        %2950 = vset.pattern.permute.xlu0 0
        %2951 = vperm.xlu0 %2950, %v2478
        %v2952 = vpop.permute.xlu0 %2951
        %2953 = vset.pattern.permute.xlu0 0
        %2954 = vperm.xlu0 %2953, %v2479
        %v2955 = vpop.permute.xlu0 %2954
        %2956 = vset.pattern.permute.xlu0 0
        %2957 = vperm.xlu0 %2956, %v2480
        %v2958 = vpop.permute.xlu0 %2957
        %2959 = vset.pattern.permute.xlu0 0
        %2960 = vperm.xlu0 %2959, %v2481
        %v2961 = vpop.permute.xlu0 %2960
        %2962 = vset.pattern.permute.xlu0 0
        %2963 = vperm.xlu0 %2962, %v2482
        %v2964 = vpop.permute.xlu0 %2963
        %2965 = vset.pattern.permute.xlu0 0
        %2966 = vperm.xlu0 %2965, %v2483
        %v2967 = vpop.permute.xlu0 %2966
        %2968 = vset.pattern.permute.xlu0 0
        %2969 = vperm.xlu0 %2968, %v2484
        %v2970 = vpop.permute.xlu0 %2969
        %2971 = vset.pattern.permute.xlu0 0
        %2972 = vperm.xlu0 %2971, %v2485
        %v2973 = vpop.permute.xlu0 %2972
        %2974 = vset.pattern.permute.xlu0 0
        %2975 = vperm.xlu0 %2974, %v2486
        %v2976 = vpop.permute.xlu0 %2975
        %2977 = vset.pattern.permute.xlu0 0
        %2978 = vperm.xlu0 %2977, %v2487
        %v2979 = vpop.permute.xlu0 %2978
        %2980 = vset.pattern.permute.xlu0 0
        %2981 = vperm.xlu0 %2980, %v2488
        %v2982 = vpop.permute.xlu0 %2981
        %2983 = vset.pattern.permute.xlu0 0
        %2984 = vperm.xlu0 %2983, %v2489
        %v2985 = vpop.permute.xlu0 %2984
        %2986 = vset.pattern.permute.xlu0 0
        %2987 = vperm.xlu0 %2986, %v2490
        %v2988 = vpop.permute.xlu0 %2987
        %2989 = vset.pattern.permute.xlu0 0
        %2990 = vperm.xlu0 %2989, %v2491
        %v2991 = vpop.permute.xlu0 %2990
        %2992 = vset.pattern.permute.xlu0 0
        %2993 = vperm.xlu0 %2992, %v2492
        %v2994 = vpop.permute.xlu0 %2993
        %2995 = vset.pattern.permute.xlu0 0
        %2996 = vperm.xlu0 %2995, %v2493
        %v2997 = vpop.permute.xlu0 %2996
        %2998 = vset.pattern.permute.xlu0 0
        %2999 = vperm.xlu0 %2998, %v2494
        %v3000 = vpop.permute.xlu0 %2999
        %3001 = vset.pattern.permute.xlu0 0
        %3002 = vperm.xlu0 %3001, %v2495
        %v3003 = vpop.permute.xlu0 %3002
        %3004 = vset.pattern.permute.xlu0 0
        %3005 = vperm.xlu0 %3004, %v2496
        %v3006 = vpop.permute.xlu0 %3005
        %3007 = vset.pattern.permute.xlu0 0
        %3008 = vperm.xlu0 %3007, %v2497
        %v3009 = vpop.permute.xlu0 %3008
        %v3010 = vperm.slane %v2628, %v871
        %v3011 = vperm.slane %v2631, %v873
        %v3012 = vsel %vm875, %v3011, %v3010
        %v3013 = vperm.slane %v2634, %v877
        %v3014 = vsel %vm879, %v3013, %v3012
        %v3015 = vperm.slane %v2637, %v881
        %v3016 = vsel %vm883, %v3015, %v3014
        %v3017 = vperm.slane %v2640, %v885
        %v3018 = vsel %vm887, %v3017, %v3016
        %v3019 = vperm.slane %v2643, %v889
        %v3020 = vsel %vm891, %v3019, %v3018
        %v3021 = vperm.slane %v2646, %v893
        %v3022 = vsel %vm895, %v3021, %v3020
        %v3023 = vperm.slane %v2649, %v897
        %v3024 = vsel %vm899, %v3023, %v3022
        %v3025 = vperm.slane %v2652, %v901
        %v3026 = vsel %vm903, %v3025, %v3024
        %v3027 = vperm.slane %v2655, %v905
        %v3028 = vsel %vm907, %v3027, %v3026
        %v3029 = vperm.slane %v2658, %v909
        %v3030 = vsel %vm911, %v3029, %v3028
        %v3031 = vperm.slane %v2661, %v913
        %v3032 = vsel %vm915, %v3031, %v3030
        %v3033 = vperm.slane %v2664, %v917
        %v3034 = vsel %vm919, %v3033, %v3032
        %v3035 = vperm.slane %v2667, %v921
        %v3036 = vsel %vm923, %v3035, %v3034
        %v3037 = vperm.slane %v2670, %v925
        %v3038 = vsel %vm927, %v3037, %v3036
        %v3039 = vperm.slane %v2673, %v929
        %v3040 = vsel %vm931, %v3039, %v3038
        %v3041 = vperm.slane %v2676, %v871
        %v3042 = vperm.slane %v2679, %v873
        %v3043 = vsel %vm875, %v3042, %v3041
        %v3044 = vperm.slane %v2682, %v877
        %v3045 = vsel %vm879, %v3044, %v3043
        %v3046 = vperm.slane %v2685, %v881
        %v3047 = vsel %vm883, %v3046, %v3045
        %v3048 = vperm.slane %v2688, %v885
        %v3049 = vsel %vm887, %v3048, %v3047
        %v3050 = vperm.slane %v2691, %v889
        %v3051 = vsel %vm891, %v3050, %v3049
        %v3052 = vperm.slane %v2694, %v893
        %v3053 = vsel %vm895, %v3052, %v3051
        %v3054 = vperm.slane %v2697, %v897
        %v3055 = vsel %vm899, %v3054, %v3053
        %v3056 = vperm.slane %v2700, %v901
        %v3057 = vsel %vm903, %v3056, %v3055
        %v3058 = vperm.slane %v2703, %v905
        %v3059 = vsel %vm907, %v3058, %v3057
        %v3060 = vperm.slane %v2706, %v909
        %v3061 = vsel %vm911, %v3060, %v3059
        %v3062 = vperm.slane %v2709, %v913
        %v3063 = vsel %vm915, %v3062, %v3061
        %v3064 = vperm.slane %v2712, %v917
        %v3065 = vsel %vm919, %v3064, %v3063
        %v3066 = vperm.slane %v2715, %v921
        %v3067 = vsel %vm923, %v3066, %v3065
        %v3068 = vperm.slane %v2718, %v925
        %v3069 = vsel %vm927, %v3068, %v3067
        %v3070 = vperm.slane %v2721, %v929
        %v3071 = vsel %vm931, %v3070, %v3069
        %v3072 = vperm.slane %v2724, %v871
        %v3073 = vperm.slane %v2727, %v873
        %v3074 = vsel %vm875, %v3073, %v3072
        %v3075 = vperm.slane %v2730, %v877
        %v3076 = vsel %vm879, %v3075, %v3074
        %v3077 = vperm.slane %v2733, %v881
        %v3078 = vsel %vm883, %v3077, %v3076
        %v3079 = vperm.slane %v2736, %v885
        %v3080 = vsel %vm887, %v3079, %v3078
        %v3081 = vperm.slane %v2739, %v889
        %v3082 = vsel %vm891, %v3081, %v3080
        %v3083 = vperm.slane %v2742, %v893
        %v3084 = vsel %vm895, %v3083, %v3082
        %v3085 = vperm.slane %v2745, %v897
        %v3086 = vsel %vm899, %v3085, %v3084
        %v3087 = vperm.slane %v2748, %v901
        %v3088 = vsel %vm903, %v3087, %v3086
        %v3089 = vperm.slane %v2751, %v905
        %v3090 = vsel %vm907, %v3089, %v3088
        %v3091 = vperm.slane %v2754, %v909
        %v3092 = vsel %vm911, %v3091, %v3090
        %v3093 = vperm.slane %v2757, %v913
        %v3094 = vsel %vm915, %v3093, %v3092
        %v3095 = vperm.slane %v2760, %v917
        %v3096 = vsel %vm919, %v3095, %v3094
        %v3097 = vperm.slane %v2763, %v921
        %v3098 = vsel %vm923, %v3097, %v3096
        %v3099 = vperm.slane %v2766, %v925
        %v3100 = vsel %vm927, %v3099, %v3098
        %v3101 = vperm.slane %v2769, %v929
        %v3102 = vsel %vm931, %v3101, %v3100
        %v3103 = vperm.slane %v2772, %v871
        %v3104 = vperm.slane %v2775, %v873
        %v3105 = vsel %vm875, %v3104, %v3103
        %v3106 = vperm.slane %v2778, %v877
        %v3107 = vsel %vm879, %v3106, %v3105
        %v3108 = vperm.slane %v2781, %v881
        %v3109 = vsel %vm883, %v3108, %v3107
        %v3110 = vperm.slane %v2784, %v885
        %v3111 = vsel %vm887, %v3110, %v3109
        %v3112 = vperm.slane %v2787, %v889
        %v3113 = vsel %vm891, %v3112, %v3111
        %v3114 = vperm.slane %v2790, %v893
        %v3115 = vsel %vm895, %v3114, %v3113
        %v3116 = vperm.slane %v2793, %v897
        %v3117 = vsel %vm899, %v3116, %v3115
        %v3118 = vperm.slane %v2796, %v901
        %v3119 = vsel %vm903, %v3118, %v3117
        %v3120 = vperm.slane %v2799, %v905
        %v3121 = vsel %vm907, %v3120, %v3119
        %v3122 = vperm.slane %v2802, %v909
        %v3123 = vsel %vm911, %v3122, %v3121
        %v3124 = vperm.slane %v2805, %v913
        %v3125 = vsel %vm915, %v3124, %v3123
        %v3126 = vperm.slane %v2808, %v917
        %v3127 = vsel %vm919, %v3126, %v3125
        %v3128 = vperm.slane %v2811, %v921
        %v3129 = vsel %vm923, %v3128, %v3127
        %v3130 = vperm.slane %v2814, %v925
        %v3131 = vsel %vm927, %v3130, %v3129
        %v3132 = vperm.slane %v2817, %v929
        %v3133 = vsel %vm931, %v3132, %v3131
        %v3134 = vperm.slane %v2820, %v871
        %v3135 = vperm.slane %v2823, %v873
        %v3136 = vsel %vm875, %v3135, %v3134
        %v3137 = vperm.slane %v2826, %v877
        %v3138 = vsel %vm879, %v3137, %v3136
        %v3139 = vperm.slane %v2829, %v881
        %v3140 = vsel %vm883, %v3139, %v3138
        %v3141 = vperm.slane %v2832, %v885
        %v3142 = vsel %vm887, %v3141, %v3140
        %v3143 = vperm.slane %v2835, %v889
        %v3144 = vsel %vm891, %v3143, %v3142
        %v3145 = vperm.slane %v2838, %v893
        %v3146 = vsel %vm895, %v3145, %v3144
        %v3147 = vperm.slane %v2841, %v897
        %v3148 = vsel %vm899, %v3147, %v3146
        %v3149 = vperm.slane %v2844, %v901
        %v3150 = vsel %vm903, %v3149, %v3148
        %v3151 = vperm.slane %v2847, %v905
        %v3152 = vsel %vm907, %v3151, %v3150
        %v3153 = vperm.slane %v2850, %v909
        %v3154 = vsel %vm911, %v3153, %v3152
        %v3155 = vperm.slane %v2853, %v913
        %v3156 = vsel %vm915, %v3155, %v3154
        %v3157 = vperm.slane %v2856, %v917
        %v3158 = vsel %vm919, %v3157, %v3156
        %v3159 = vperm.slane %v2859, %v921
        %v3160 = vsel %vm923, %v3159, %v3158
        %v3161 = vperm.slane %v2862, %v925
        %v3162 = vsel %vm927, %v3161, %v3160
        %v3163 = vperm.slane %v2865, %v929
        %v3164 = vsel %vm931, %v3163, %v3162
        %v3165 = vperm.slane %v2868, %v871
        %v3166 = vperm.slane %v2871, %v873
        %v3167 = vsel %vm875, %v3166, %v3165
        %v3168 = vperm.slane %v2874, %v877
        %v3169 = vsel %vm879, %v3168, %v3167
        %v3170 = vperm.slane %v2877, %v881
        %v3171 = vsel %vm883, %v3170, %v3169
        %v3172 = vperm.slane %v2880, %v885
        %v3173 = vsel %vm887, %v3172, %v3171
        %v3174 = vperm.slane %v2883, %v889
        %v3175 = vsel %vm891, %v3174, %v3173
        %v3176 = vperm.slane %v2886, %v893
        %v3177 = vsel %vm895, %v3176, %v3175
        %v3178 = vperm.slane %v2889, %v897
        %v3179 = vsel %vm899, %v3178, %v3177
        %v3180 = vperm.slane %v2892, %v901
        %v3181 = vsel %vm903, %v3180, %v3179
        %v3182 = vperm.slane %v2895, %v905
        %v3183 = vsel %vm907, %v3182, %v3181
        %v3184 = vperm.slane %v2898, %v909
        %v3185 = vsel %vm911, %v3184, %v3183
        %v3186 = vperm.slane %v2901, %v913
        %v3187 = vsel %vm915, %v3186, %v3185
        %v3188 = vperm.slane %v2904, %v917
        %v3189 = vsel %vm919, %v3188, %v3187
        %v3190 = vperm.slane %v2907, %v921
        %v3191 = vsel %vm923, %v3190, %v3189
        %v3192 = vperm.slane %v2910, %v925
        %v3193 = vsel %vm927, %v3192, %v3191
        %v3194 = vperm.slane %v2913, %v929
        %v3195 = vsel %vm931, %v3194, %v3193
        %v3196 = vperm.slane %v2916, %v871
        %v3197 = vperm.slane %v2919, %v873
        %v3198 = vsel %vm875, %v3197, %v3196
        %v3199 = vperm.slane %v2922, %v877
        %v3200 = vsel %vm879, %v3199, %v3198
        %v3201 = vperm.slane %v2925, %v881
        %v3202 = vsel %vm883, %v3201, %v3200
        %v3203 = vperm.slane %v2928, %v885
        %v3204 = vsel %vm887, %v3203, %v3202
        %v3205 = vperm.slane %v2931, %v889
        %v3206 = vsel %vm891, %v3205, %v3204
        %v3207 = vperm.slane %v2934, %v893
        %v3208 = vsel %vm895, %v3207, %v3206
        %v3209 = vperm.slane %v2937, %v897
        %v3210 = vsel %vm899, %v3209, %v3208
        %v3211 = vperm.slane %v2940, %v901
        %v3212 = vsel %vm903, %v3211, %v3210
        %v3213 = vperm.slane %v2943, %v905
        %v3214 = vsel %vm907, %v3213, %v3212
        %v3215 = vperm.slane %v2946, %v909
        %v3216 = vsel %vm911, %v3215, %v3214
        %v3217 = vperm.slane %v2949, %v913
        %v3218 = vsel %vm915, %v3217, %v3216
        %v3219 = vperm.slane %v2952, %v917
        %v3220 = vsel %vm919, %v3219, %v3218
        %v3221 = vperm.slane %v2955, %v921
        %v3222 = vsel %vm923, %v3221, %v3220
        %v3223 = vperm.slane %v2958, %v925
        %v3224 = vsel %vm927, %v3223, %v3222
        %v3225 = vperm.slane %v2961, %v929
        %v3226 = vsel %vm931, %v3225, %v3224
        %v3227 = vperm.slane %v2964, %v871
        %v3228 = vperm.slane %v2967, %v873
        %v3229 = vsel %vm875, %v3228, %v3227
        %v3230 = vperm.slane %v2970, %v877
        %v3231 = vsel %vm879, %v3230, %v3229
        %v3232 = vperm.slane %v2973, %v881
        %v3233 = vsel %vm883, %v3232, %v3231
        %v3234 = vperm.slane %v2976, %v885
        %v3235 = vsel %vm887, %v3234, %v3233
        %v3236 = vperm.slane %v2979, %v889
        %v3237 = vsel %vm891, %v3236, %v3235
        %v3238 = vperm.slane %v2982, %v893
        %v3239 = vsel %vm895, %v3238, %v3237
        %v3240 = vperm.slane %v2985, %v897
        %v3241 = vsel %vm899, %v3240, %v3239
        %v3242 = vperm.slane %v2988, %v901
        %v3243 = vsel %vm903, %v3242, %v3241
        %v3244 = vperm.slane %v2991, %v905
        %v3245 = vsel %vm907, %v3244, %v3243
        %v3246 = vperm.slane %v2994, %v909
        %v3247 = vsel %vm911, %v3246, %v3245
        %v3248 = vperm.slane %v2997, %v913
        %v3249 = vsel %vm915, %v3248, %v3247
        %v3250 = vperm.slane %v3000, %v917
        %v3251 = vsel %vm919, %v3250, %v3249
        %v3252 = vperm.slane %v3003, %v921
        %v3253 = vsel %vm923, %v3252, %v3251
        %v3254 = vperm.slane %v3006, %v925
        %v3255 = vsel %vm927, %v3254, %v3253
        %v3256 = vperm.slane %v3009, %v929
        %v3257 = vsel %vm931, %v3256, %v3255
        %v3258 = vsel %vm1150, %v3071, %v3040
        %v3259 = vsel %vm1152, %v3102, %v3258
        %v3260 = vsel %vm1154, %v3133, %v3259
        %v3261 = vsel %vm1156, %v3164, %v3260
        %v3262 = vsel %vm1158, %v3195, %v3261
        %v3263 = vsel %vm1160, %v3226, %v3262
        %v3264 = vsel %vm1162, %v3257, %v3263
        %3266 = vst [vmem:[%s203] sm:$0xff] %v3264
        %s3267 = sand.u32 %s82, 1
        %s3268 = scalar_lea.sflag [#allocation4], %s3267
        %s3269 = sand.u32 %s82, 1
        %s3270 = smul.addr %s3269, 8
        %s3271 = scalar_lea.vmem [#allocation7], %s3270
        // Predicated region
        $region37: #{tpu_custom_call.1} parent=27 // pred_check
          %p3272 = pneg %p92
        $region38: #{tpu_custom_call.1} parent=27 // pred_check_branch
          %3274 = sbr.rel (%p3272) target = $region40
        $region39: #{tpu_custom_call.1} parent=27 // pred_region
          %3276 = vsyncadd %s3268, 0
          %s3277 = smul.addr %s22, 8
          %s3278 = scalar_lea.hbm %s2, %s3277
          %s3280 = sshll.u32 %s3271, 4
          %s3281 = int_to_ptr.vmem [resolvable:$true] %s3280
          %s3282 = sshll.u32 %s3278, 4
          %s3283 = int_to_ptr.hbm [resolvable:$true] %s3282
          %3285 = dma.vmem_to_hbm [thread:$0]  %s3281, 128, %s3283, %s3268
        $region40: #{tpu_custom_call.1} parent=27 // pred_fallthru
          _
      $region28: #{tpu_custom_call.1} parent=5 // pred_fallthru
        _
      %p3286 = scmp.le.s32.totalorder 2, %s17
      // Predicated region
      $region41: #{tpu_custom_call.1} parent=5 // pred_check
        %p3287 = pneg %p3286
      $region42: #{tpu_custom_call.1} parent=5 // pred_check_branch
        %3289 = sbr.rel (%p3287) target = $region44
      $region43: #{tpu_custom_call.1} parent=5 // pred_region
        %s3290 = ssub.s32 %s17, 2
        // Predicated region
        $region45: #{tpu_custom_call.1} parent=43 // pred_check
          %p3291 = pneg %p98
        $region46: #{tpu_custom_call.1} parent=43 // pred_check_branch
          %3293 = sbr.rel (%p3291) target = $region48
        $region47: #{tpu_custom_call.1} parent=43 // pred_region
          %s3294 = sand.u32 %s83, 1
          %s3295 = scalar_lea.sflag [#allocation4], %s3294
          %s3296 = sand.u32 %s83, 1
          %s3297 = smul.addr %s3296, 8
          %s3298 = scalar_lea.vmem [#allocation7], %s3297
          %3300 = dma.done %s3295, 128
        $region48: #{tpu_custom_call.1} parent=43 // pred_fallthru
          _
      $region44: #{tpu_custom_call.1} parent=5 // pred_fallthru
        _
    $region6: #{tpu_custom_call.1} parent=1 // loop_footer
      %s21 = sadd.s32 1, %s17
    $region7: #{tpu_custom_call.1} parent=1 // loop_footer_branch
      %16 = sbr.rel target = $region3
    $region8: #{tpu_custom_call.1} parent=1 // loop_exit
      _
    %3301 = vsyncpa [#allocation3], 1
    %s3302 = scalar_lea.sflag [#allocation3], 1
    %3303 = vsyncpa %s3302, 1
    %3304 = vsyncpa [#allocation6], 1
    %s3305 = scalar_lea.sflag [#allocation6], 1
    %3306 = vsyncpa %s3305, 1
    %3307 = vsyncpa [#allocation4], 1
    %s3308 = scalar_lea.sflag [#allocation4], 1
    %3309 = vsyncpa %s3308, 1

</llo_original>
